<compile_context>
chip_gen: v7x
topology: tpu7x:2x2x1
jax: 0.10.0
libtpu: 0.0.40
codegen_flags: <defaults>
</compile_context>

<pallas_src>
import jax
import jax.numpy as jnp
from jax.experimental import pallas as pl
from jax.experimental.pallas import tpu as pltpu


# ---------------------------------------------------------------------------
# helpers
# ---------------------------------------------------------------------------
def _round_up(x, m):
    return ((x + m - 1) // m) * m


def _pick_tile(total, pref, align):
    """Largest tile <= pref that divides `total` and is a multiple of `align`
    (falls back to the full extent, which is always a legal block)."""
    if total <= pref:
        return total
    t = (pref // align) * align
    while t >= align:
        if total % t == 0:
            return t
        t -= align
    return total


# ---------------------------------------------------------------------------
# Kernel 1: tiled patch-embedding matmul + bias + ReLU
#   (normalization already folded into w/b by the wrapper; bf16 operands,
#    f32 accumulation in a VMEM scratch, finalize on the last k step)
# ---------------------------------------------------------------------------
def _patch_embed_kernel(x_ref, w_ref, b_ref, o_ref, acc_ref):
    @pl.when(pl.program_id(2) == 0)
    def _():
        acc_ref[...] = jnp.zeros_like(acc_ref)

    acc_ref[...] += jnp.dot(x_ref[...], w_ref[...],
                            preferred_element_type=jnp.float32)

    @pl.when(pl.program_id(2) == pl.num_programs(2) - 1)
    def _():
        o_ref[...] = jnp.maximum(acc_ref[...] + b_ref[...], 0.0)


def patch_embed(patches_bf16, w_bf16, b_f32, *, tm_pref=256, tn_pref=256,
                tk_pref=512):
    n, k = patches_bf16.shape
    _, d = w_bf16.shape
    tm = _pick_tile(n, tm_pref, 8)
    tn = _pick_tile(d, tn_pref, 128)
    tk = _pick_tile(k, tk_pref, 128)
    grid = (n // tm, d // tn, k // tk)
    return pl.pallas_call(
        _patch_embed_kernel,
        out_shape=jax.ShapeDtypeStruct((n, d), jnp.float32),
        grid_spec=pltpu.PrefetchScalarGridSpec(
            num_scalar_prefetch=0,
            grid=grid,
            in_specs=[
                pl.BlockSpec((tm, tk), lambda i, j, kk: (i, kk)),
                pl.BlockSpec((tk, tn), lambda i, j, kk: (kk, j)),
                pl.BlockSpec((1, tn), lambda i, j, kk: (0, j)),
            ],
            out_specs=pl.BlockSpec((tm, tn), lambda i, j, kk: (i, j)),
            scratch_shapes=[pltpu.VMEM((tm, tn), jnp.float32)],
        ),
        compiler_params=pltpu.CompilerParams(
            dimension_semantics=("parallel", "parallel", "arbitrary"),
            vmem_limit_bytes=32 * 1024 * 1024,
        ),
    )(patches_bf16, w_bf16, b_f32)


# ---------------------------------------------------------------------------
# Kernel 2: fused P_Distance_Matrix(X), P_Distance_Matrix(Y), P_removal
#   pairwise distances via the Gram identity (MXU), U-centering in f32,
#   projection-removal epilogue.  Everything stays resident in VMEM,
#   one launch instead of three.
# ---------------------------------------------------------------------------
def _pdc_distance_kernel(fx_ref, fy_ref, o_ref):
    def u_centered(x):
        """U-centered pairwise Euclidean distance matrix (P_Distance_Matrix)."""
        n = x.shape[0]
        # Gram form: d2_ij = |x_i|^2 + |x_j|^2 - 2 <x_i, x_j>  (MXU matmul,
        # no [B,B,D] broadcasted diff materialized in VMEM).
        gram = jax.lax.dot_general(x, x, (((1,), (1,)), ((), ())),
                                   preferred_element_type=jnp.float32)
        sq = jnp.sum(x * x, axis=1, keepdims=True)            # |x_i|^2  (B,1)
        d2 = jnp.maximum(sq + sq.T - 2.0 * gram, 0.0)          # clamp cancellation
        a = jnp.sqrt(d2 + 1e-12)                               # eps matches reference
        col = jnp.sum(a, axis=0, keepdims=True) / (n - 2)
        row = jnp.sum(a, axis=1, keepdims=True) / (n - 2)
        tot = jnp.sum(a) / ((n - 1) * (n - 2))
        A = a - col - row + tot
        ii = jax.lax.broadcasted_iota(jnp.int32, (n, n), 0)
        jj = jax.lax.broadcasted_iota(jnp.int32, (n, n), 1)
        return jnp.where(ii == jj, 0.0, A)                     # zero diagonal

    A = u_centered(fx_ref[...])
    C = u_centered(fy_ref[...])
    # P_removal: A - (<A,C>/<C,C>) * C   (kept resident in vregs / VMEM)
    num = jnp.sum(A * C)
    den = jnp.sum(C * C)
    coef = num / den
    o_ref[...] = A - coef * C


def pdc_distance(features_x, features_y):
    b = features_x.shape[0]
    return pl.pallas_call(
        _pdc_distance_kernel,
        out_shape=jax.ShapeDtypeStruct((b, b), jnp.float32),
        grid=(1,),
        in_specs=[
            pl.BlockSpec(features_x.shape, lambda i: (0, 0)),
            pl.BlockSpec(features_y.shape, lambda i: (0, 0)),
        ],
        out_specs=pl.BlockSpec((b, b), lambda i: (0, 0)),
        compiler_params=pltpu.CompilerParams(
            dimension_semantics=("arbitrary",),
            vmem_limit_bytes=32 * 1024 * 1024,
        ),
    )(features_x, features_y)


# ---------------------------------------------------------------------------
# Glue: patch extraction, normalization folding, parameter setup, forward.
# ---------------------------------------------------------------------------
def extract_patches(x_nchw, patch):
    """NCHW image -> (B*num_patches, C*P*P) rows, patch flattened (c, py, px)."""
    b, c, h, w = x_nchw.shape
    hp, wp = h // patch, w // patch
    x = x_nchw.reshape(b, c, hp, patch, wp, patch)
    x = jnp.transpose(x, (0, 2, 4, 1, 3, 5))          # B, hp, wp, C, P, P
    # TODO(synk): this transpose could be folded into the kernel's BlockSpec
    # index_map (strided DMA) to save one HBM round trip of the patch matrix.
    return x.reshape(b * hp * wp, c * patch * patch)


def make_backbone_params(key, in_ch, patch, embed_dim):
    k_w, k_b = jax.random.split(key)
    k_in = in_ch * patch * patch
    w = (0.02 * jax.random.normal(k_w, (k_in, embed_dim))).astype(jnp.float32)
    b = (0.02 * jax.random.normal(k_b, (1, embed_dim))).astype(jnp.float32)
    return w, b


def _fold_and_pad(w, b, mean, std, patch):
    """Fold channelwise normalize into (w, b); pad K and D to lane-dense 128s.

    x @ W' + b' == ((x - mean) / std) @ W + b  with
      W' = W / std_col,  b' = b - (mean/std) @ W
    Zero-padded K rows / D columns contribute exactly 0 (and 0 after ReLU),
    so the downstream distance matrices are unchanged.
    """
    k, d = w.shape
    mean_vec = jnp.repeat(mean, patch * patch).reshape(1, k)
    std_vec = jnp.repeat(std, patch * patch).reshape(1, k)
    w_folded = w / std_vec.reshape(k, 1)
    b_folded = b - (mean_vec / std_vec) @ w
    k_pad = _round_up(k, 128)
    d_pad = _round_up(d, 128)
    w_p = jnp.pad(w_folded, ((0, k_pad - k), (0, d_pad - d)))
    b_p = jnp.pad(b_folded, ((0, 0), (0, d_pad - d)))
    return w_p.astype(jnp.bfloat16), b_p.astype(jnp.float32), k_pad


def pdc_model_forward(inputs, paramsX, paramsY, normX, normY):
    """Reproduces PDC_Model.forward(inputs)."""
    batch_size = inputs.shape[0]

    def branch(params, norm):
        w, b, patch = params
        mean, std = norm
        w_p, b_p, k_pad = _fold_and_pad(w, b, mean, std, patch)
        patches = extract_patches(inputs, patch)               # (B*N, K) f32
        n_rows, k = patches.shape
        patches_p = jnp.pad(patches.astype(jnp.bfloat16),
                            ((0, 0), (0, k_pad - k)))
        feats = patch_embed(patches_p, w_p, b_p)                # (B*N, D_pad) f32
        # Padded embed columns are exactly 0 after ReLU, so they do not affect
        # the pairwise distances -> keep them (lane-dense) instead of slicing.
        return feats.reshape(batch_size, -1)

    featuresX = branch(paramsX, normX)
    featuresY = branch(paramsY, normY)
    # matrix_A, matrix_B and the P_removal projection are fused in one kernel.
    return pdc_distance(featuresX, featuresY)


if __name__ == "__main__":
    key = jax.random.PRNGKey(0)
    k_x, k_mx, k_my = jax.random.split(key, 3)

    # batch must be > 2 for the U-centering denominators (n-1), (n-2).
    B, C, H, W = 8, 3, 16, 16
    x = jax.random.uniform(k_x, (B, C, H, W), dtype=jnp.float32)

    # modelX: patch 4, embed 32 ; modelY: patch 8, embed 16 (synthetic backbones)
    wX, bX = make_backbone_params(k_mx, C, 4, 32)
    wY, bY = make_backbone_params(k_my, C, 8, 16)
    paramsX = (wX, bX, 4)
    paramsY = (wY, bY, 8)

    # normalize_X / normalize_Y (channelwise mean/std, ImageNet-ish vs 0.5)
    normX = (jnp.array([0.485, 0.456, 0.406], jnp.float32),
             jnp.array([0.229, 0.224, 0.225], jnp.float32))
    normY = (jnp.array([0.5, 0.5, 0.5], jnp.float32),
             jnp.array([0.5, 0.5, 0.5], jnp.float32))

    fwd = jax.jit(lambda xx: pdc_model_forward(xx, paramsX, paramsY, normX, normY))
    out = jax.block_until_ready(fwd(x))

    assert out.shape == (B, B) and out.dtype == jnp.float32
    assert bool(jnp.all(jnp.isfinite(out)))
    print("KERNEL_OK")
</pallas_src>

<mosaic_0001>
module attributes {stable_mosaic.version = 11 : i64} {
  func.func @_patch_embed_kernel(%arg0: i32, %arg1: i32, %arg2: i32, %arg3: memref<128x128xbf16, #tpu.memory_space<vmem>>, %arg4: memref<128x128xbf16, #tpu.memory_space<vmem>>, %arg5: memref<1x128xf32, #tpu.memory_space<vmem>>, %arg6: memref<128x128xf32, #tpu.memory_space<vmem>>, %arg7: memref<128x128xf32, #tpu.memory_space<vmem>>) attributes {dimension_semantics = [#tpu.dimension_semantics<parallel>, #tpu.dimension_semantics<parallel>, #tpu.dimension_semantics<arbitrary>], iteration_bounds = array<i64: 1, 1, 1>, scalar_prefetch = 0 : i64, scratch_operands = 1 : i64, tpu.core_type = #tpu.core_type<tc>, window_params = [{transform_indices = @transform_0, window_bounds = array<i64: 128, 128>}, {transform_indices = @transform_1, window_bounds = array<i64: 128, 128>}, {transform_indices = @transform_2, window_bounds = array<i64: 1, 128>}, {transform_indices = @transform_3, window_bounds = array<i64: 128, 128>}]} {
    %c0_i32 = arith.constant 0 : i32
    %0 = arith.cmpi eq, %arg2, %c0_i32 : i32
    %1 = arith.extui %0 : i1 to i32
    %c0_i32_0 = arith.constant 0 : i32
    %2 = arith.cmpi ne, %1, %c0_i32_0 : i32
    scf.if %2 {
      %cst_10 = arith.constant 0.000000e+00 : f32
      %12 = vector.broadcast %cst_10 : f32 to vector<128x128xf32>
      %c0_11 = arith.constant 0 : index
      %c0_12 = arith.constant 0 : index
      %13 = vector.load %arg7[%c0_11, %c0_12] : memref<128x128xf32, #tpu.memory_space<vmem>>, vector<128x128xf32>
      tpu.vector_store %arg7[%c0_11, %c0_12], %12 {strides = array<i32>} : memref<128x128xf32, #tpu.memory_space<vmem>>, vector<128x128xf32>,
    } else {
    }
    %c0 = arith.constant 0 : index
    %c0_1 = arith.constant 0 : index
    %3 = vector.load %arg7[%c0, %c0_1] : memref<128x128xf32, #tpu.memory_space<vmem>>, vector<128x128xf32>
    %c0_2 = arith.constant 0 : index
    %c0_3 = arith.constant 0 : index
    %4 = vector.load %arg3[%c0_2, %c0_3] : memref<128x128xbf16, #tpu.memory_space<vmem>>, vector<128x128xbf16>
    %c0_4 = arith.constant 0 : index
    %c0_5 = arith.constant 0 : index
    %5 = vector.load %arg4[%c0_4, %c0_5] : memref<128x128xbf16, #tpu.memory_space<vmem>>, vector<128x128xbf16>
    %cst = arith.constant dense<0.000000e+00> : vector<128x128xf32>
    %6 = tpu.matmul %4, %5, %cst {dimension_numbers = #tpu.dot_dimension_numbers<[1], [0], [0], [1], [0, 0, 1, 1], [], []>} : vector<128x128xbf16>, vector<128x128xbf16>, vector<128x128xf32> -> vector<128x128xf32>
    %7 = arith.addf %3, %6 : vector<128x128xf32>
    %c0_6 = arith.constant 0 : index
    %c0_7 = arith.constant 0 : index
    %8 = vector.load %arg7[%c0_6, %c0_7] : memref<128x128xf32, #tpu.memory_space<vmem>>, vector<128x128xf32>
    tpu.vector_store %arg7[%c0_6, %c0_7], %7 {strides = array<i32>} : memref<128x128xf32, #tpu.memory_space<vmem>>, vector<128x128xf32>,
    %c0_i32_8 = arith.constant 0 : i32
    %9 = arith.cmpi eq, %arg2, %c0_i32_8 : i32
    %10 = arith.extui %9 : i1 to i32
    %c0_i32_9 = arith.constant 0 : i32
    %11 = arith.cmpi ne, %10, %c0_i32_9 : i32
    scf.if %11 {
      %c0_10 = arith.constant 0 : index
      %c0_11 = arith.constant 0 : index
      %12 = vector.load %arg7[%c0_10, %c0_11] : memref<128x128xf32, #tpu.memory_space<vmem>>, vector<128x128xf32>
      %c0_12 = arith.constant 0 : index
      %c0_13 = arith.constant 0 : index
      %13 = vector.load %arg5[%c0_12, %c0_13] : memref<1x128xf32, #tpu.memory_space<vmem>>, vector<1x128xf32>
      %14 = vector.broadcast %13 : vector<1x128xf32> to vector<128x128xf32>
      %15 = arith.addf %12, %14 : vector<128x128xf32>
      %cst_14 = arith.constant 0.000000e+00 : f32
      %16 = vector.broadcast %cst_14 : f32 to vector<128x128xf32>
      %17 = arith.maximumf %15, %16 : vector<128x128xf32>
      %c0_15 = arith.constant 0 : index
      %c0_16 = arith.constant 0 : index
      %18 = vector.load %arg6[%c0_15, %c0_16] : memref<128x128xf32, #tpu.memory_space<vmem>>, vector<128x128xf32>
      tpu.vector_store %arg6[%c0_15, %c0_16], %17 {strides = array<i32>} : memref<128x128xf32, #tpu.memory_space<vmem>>, vector<128x128xf32>,
    } else {
    }
    return
  }
  func.func @transform_0(%arg0: i32, %arg1: i32, %arg2: i32) -> (i32, i32) {
    %c0_i32 = arith.constant 0 : i32
    return %arg0, %arg2 : i32, i32
  }
  func.func @transform_1(%arg0: i32, %arg1: i32, %arg2: i32) -> (i32, i32) {
    %c0_i32 = arith.constant 0 : i32
    return %arg2, %arg1 : i32, i32
  }
  func.func @transform_2(%arg0: i32, %arg1: i32, %arg2: i32) -> (i32, i32) {
    %c0_i32 = arith.constant 0 : i32
    %c0_i32_0 = arith.constant 0 : i32
    return %c0_i32, %arg1 : i32, i32
  }
  func.func @transform_3(%arg0: i32, %arg1: i32, %arg2: i32) -> (i32, i32) {
    %c0_i32 = arith.constant 0 : i32
    return %arg0, %arg1 : i32, i32
  }
}

module attributes {stable_mosaic.version = 11 : i64} {
  func.func @_pdc_distance_kernel(%arg0: i32, %arg1: memref<8x2048xf32, #tpu.memory_space<vmem>>, %arg2: memref<8x512xf32, #tpu.memory_space<vmem>>, %arg3: memref<8x8xf32, #tpu.memory_space<vmem>>) attributes {dimension_semantics = [#tpu.dimension_semantics<arbitrary>], iteration_bounds = array<i64: 1>, scalar_prefetch = 0 : i64, scratch_operands = 0 : i64, tpu.core_type = #tpu.core_type<tc>, window_params = [{pipeline_mode = #tpu.pipeline_mode<synchronous>, transform_indices = @transform_0, window_bounds = array<i64: 8, 2048>}, {pipeline_mode = #tpu.pipeline_mode<synchronous>, transform_indices = @transform_1, window_bounds = array<i64: 8, 512>}, {pipeline_mode = #tpu.pipeline_mode<synchronous>, transform_indices = @transform_2, window_bounds = array<i64: 8, 8>}]} {
    %c0 = arith.constant 0 : index
    %c0_0 = arith.constant 0 : index
    %0 = vector.load %arg1[%c0, %c0_0] : memref<8x2048xf32, #tpu.memory_space<vmem>>, vector<8x2048xf32>
    %cst = arith.constant dense<0.000000e+00> : vector<8x8xf32>
    %1 = tpu.matmul %0, %0, %cst {dimension_numbers = #tpu.dot_dimension_numbers<[1], [1], [0], [0], [0, 0, 1, 0], [], []>} : vector<8x2048xf32>, vector<8x2048xf32>, vector<8x8xf32> -> vector<8x8xf32>
    %2 = arith.mulf %0, %0 : vector<8x2048xf32>
    %cst_1 = arith.constant dense<0.000000e+00> : vector<8xf32>
    %3 = vector.multi_reduction <add>, %2, %cst_1 [1] : vector<8x2048xf32> to vector<8xf32>
    %4 = vector.shape_cast %3 : vector<8xf32> to vector<8x1xf32>
    %5 = tpu.transpose %4, [1, 0] : vector<8x1xf32> -> vector<1x8xf32>
    %6 = vector.broadcast %4 : vector<8x1xf32> to vector<8x8xf32>
    %7 = vector.broadcast %5 : vector<1x8xf32> to vector<8x8xf32>
    %8 = arith.addf %6, %7 : vector<8x8xf32>
    %cst_2 = arith.constant 2.000000e+00 : f32
    %9 = vector.broadcast %cst_2 : f32 to vector<8x8xf32>
    %10 = arith.mulf %9, %1 : vector<8x8xf32>
    %11 = arith.subf %8, %10 : vector<8x8xf32>
    %cst_3 = arith.constant 0.000000e+00 : f32
    %12 = vector.broadcast %cst_3 : f32 to vector<8x8xf32>
    %13 = arith.maximumf %11, %12 : vector<8x8xf32>
    %cst_4 = arith.constant 9.99999996E-13 : f32
    %14 = vector.broadcast %cst_4 : f32 to vector<8x8xf32>
    %15 = arith.addf %13, %14 : vector<8x8xf32>
    %16 = math.sqrt %15 : vector<8x8xf32>
    %cst_5 = arith.constant dense<0.000000e+00> : vector<8xf32>
    %17 = vector.multi_reduction <add>, %16, %cst_5 [0] : vector<8x8xf32> to vector<8xf32>
    %18 = vector.shape_cast %17 : vector<8xf32> to vector<1x8xf32>
    %cst_6 = arith.constant 6.000000e+00 : f32
    %19 = vector.broadcast %cst_6 : f32 to vector<1x8xf32>
    %20 = arith.divf %18, %19 : vector<1x8xf32>
    %cst_7 = arith.constant dense<0.000000e+00> : vector<8xf32>
    %21 = vector.multi_reduction <add>, %16, %cst_7 [1] : vector<8x8xf32> to vector<8xf32>
    %22 = vector.shape_cast %21 : vector<8xf32> to vector<8x1xf32>
    %cst_8 = arith.constant 6.000000e+00 : f32
    %23 = vector.broadcast %cst_8 : f32 to vector<8x1xf32>
    %24 = arith.divf %22, %23 : vector<8x1xf32>
    %25 = vector.shape_cast %16 : vector<8x8xf32> to vector<1x8x8xf32>
    %cst_9 = arith.constant dense<0.000000e+00> : vector<1xf32>
    %26 = vector.multi_reduction <add>, %25, %cst_9 [1, 2] : vector<1x8x8xf32> to vector<1xf32>
    %27 = vector.shape_cast %26 : vector<1xf32> to vector<1x1x1xf32>
    %28 = vector.extract %27[0, 0, 0] : f32 from vector<1x1x1xf32>
    %cst_10 = arith.constant 4.200000e+01 : f32
    %29 = arith.divf %28, %cst_10 : f32
    %30 = vector.broadcast %20 : vector<1x8xf32> to vector<8x8xf32>
    %31 = arith.subf %16, %30 : vector<8x8xf32>
    %32 = vector.broadcast %24 : vector<8x1xf32> to vector<8x8xf32>
    %33 = arith.subf %31, %32 : vector<8x8xf32>
    %34 = vector.broadcast %29 : f32 to vector<8x8xf32>
    %35 = arith.addf %33, %34 : vector<8x8xf32>
    %36 = tpu.iota {dimensions = array<i32: 0>} : vector<8x8xi32>
    %37 = tpu.iota {dimensions = array<i32: 1>} : vector<8x8xi32>
    %38 = arith.cmpi eq, %36, %37 : vector<8x8xi32>
    %cst_11 = arith.constant 0.000000e+00 : f32
    %39 = vector.broadcast %cst_11 : f32 to vector<8x8xf32>
    %40 = arith.select %38, %39, %35 : vector<8x8xi1>, vector<8x8xf32>
    %c0_12 = arith.constant 0 : index
    %c0_13 = arith.constant 0 : index
    %41 = vector.load %arg2[%c0_12, %c0_13] : memref<8x512xf32, #tpu.memory_space<vmem>>, vector<8x512xf32>
    %cst_14 = arith.constant dense<0.000000e+00> : vector<8x8xf32>
    %42 = tpu.matmul %41, %41, %cst_14 {dimension_numbers = #tpu.dot_dimension_numbers<[1], [1], [0], [0], [0, 0, 1, 0], [], []>} : vector<8x512xf32>, vector<8x512xf32>, vector<8x8xf32> -> vector<8x8xf32>
    %43 = arith.mulf %41, %41 : vector<8x512xf32>
    %cst_15 = arith.constant dense<0.000000e+00> : vector<8xf32>
    %44 = vector.multi_reduction <add>, %43, %cst_15 [1] : vector<8x512xf32> to vector<8xf32>
    %45 = vector.shape_cast %44 : vector<8xf32> to vector<8x1xf32>
    %46 = tpu.transpose %45, [1, 0] : vector<8x1xf32> -> vector<1x8xf32>
    %47 = vector.broadcast %45 : vector<8x1xf32> to vector<8x8xf32>
    %48 = vector.broadcast %46 : vector<1x8xf32> to vector<8x8xf32>
    %49 = arith.addf %47, %48 : vector<8x8xf32>
    %cst_16 = arith.constant 2.000000e+00 : f32
    %50 = vector.broadcast %cst_16 : f32 to vector<8x8xf32>
    %51 = arith.mulf %50, %42 : vector<8x8xf32>
    %52 = arith.subf %49, %51 : vector<8x8xf32>
    %cst_17 = arith.constant 0.000000e+00 : f32
    %53 = vector.broadcast %cst_17 : f32 to vector<8x8xf32>
    %54 = arith.maximumf %52, %53 : vector<8x8xf32>
    %cst_18 = arith.constant 9.99999996E-13 : f32
    %55 = vector.broadcast %cst_18 : f32 to vector<8x8xf32>
    %56 = arith.addf %54, %55 : vector<8x8xf32>
    %57 = math.sqrt %56 : vector<8x8xf32>
    %cst_19 = arith.constant dense<0.000000e+00> : vector<8xf32>
    %58 = vector.multi_reduction <add>, %57, %cst_19 [0] : vector<8x8xf32> to vector<8xf32>
    %59 = vector.shape_cast %58 : vector<8xf32> to vector<1x8xf32>
    %cst_20 = arith.constant 6.000000e+00 : f32
    %60 = vector.broadcast %cst_20 : f32 to vector<1x8xf32>
    %61 = arith.divf %59, %60 : vector<1x8xf32>
    %cst_21 = arith.constant dense<0.000000e+00> : vector<8xf32>
    %62 = vector.multi_reduction <add>, %57, %cst_21 [1] : vector<8x8xf32> to vector<8xf32>
    %63 = vector.shape_cast %62 : vector<8xf32> to vector<8x1xf32>
    %cst_22 = arith.constant 6.000000e+00 : f32
    %64 = vector.broadcast %cst_22 : f32 to vector<8x1xf32>
    %65 = arith.divf %63, %64 : vector<8x1xf32>
    %66 = vector.shape_cast %57 : vector<8x8xf32> to vector<1x8x8xf32>
    %cst_23 = arith.constant dense<0.000000e+00> : vector<1xf32>
    %67 = vector.multi_reduction <add>, %66, %cst_23 [1, 2] : vector<1x8x8xf32> to vector<1xf32>
    %68 = vector.shape_cast %67 : vector<1xf32> to vector<1x1x1xf32>
    %69 = vector.extract %68[0, 0, 0] : f32 from vector<1x1x1xf32>
    %cst_24 = arith.constant 4.200000e+01 : f32
    %70 = arith.divf %69, %cst_24 : f32
    %71 = vector.broadcast %61 : vector<1x8xf32> to vector<8x8xf32>
    %72 = arith.subf %57, %71 : vector<8x8xf32>
    %73 = vector.broadcast %65 : vector<8x1xf32> to vector<8x8xf32>
    %74 = arith.subf %72, %73 : vector<8x8xf32>
    %75 = vector.broadcast %70 : f32 to vector<8x8xf32>
    %76 = arith.addf %74, %75 : vector<8x8xf32>
    %77 = tpu.iota {dimensions = array<i32: 0>} : vector<8x8xi32>
    %78 = tpu.iota {dimensions = array<i32: 1>} : vector<8x8xi32>
    %79 = arith.cmpi eq, %77, %78 : vector<8x8xi32>
    %cst_25 = arith.constant 0.000000e+00 : f32
    %80 = vector.broadcast %cst_25 : f32 to vector<8x8xf32>
    %81 = arith.select %79, %80, %76 : vector<8x8xi1>, vector<8x8xf32>
    %82 = arith.mulf %40, %81 : vector<8x8xf32>
    %83 = vector.shape_cast %82 : vector<8x8xf32> to vector<1x8x8xf32>
    %cst_26 = arith.constant dense<0.000000e+00> : vector<1xf32>
    %84 = vector.multi_reduction <add>, %83, %cst_26 [1, 2] : vector<1x8x8xf32> to vector<1xf32>
    %85 = vector.shape_cast %84 : vector<1xf32> to vector<1x1x1xf32>
    %86 = vector.extract %85[0, 0, 0] : f32 from vector<1x1x1xf32>
    %87 = arith.mulf %81, %81 : vector<8x8xf32>
    %88 = vector.shape_cast %87 : vector<8x8xf32> to vector<1x8x8xf32>
    %cst_27 = arith.constant dense<0.000000e+00> : vector<1xf32>
    %89 = vector.multi_reduction <add>, %88, %cst_27 [1, 2] : vector<1x8x8xf32> to vector<1xf32>
    %90 = vector.shape_cast %89 : vector<1xf32> to vector<1x1x1xf32>
    %91 = vector.extract %90[0, 0, 0] : f32 from vector<1x1x1xf32>
    %92 = arith.divf %86, %91 : f32
    %93 = vector.broadcast %92 : f32 to vector<8x8xf32>
    %94 = arith.mulf %93, %81 : vector<8x8xf32>
    %95 = arith.subf %40, %94 : vector<8x8xf32>
    %c0_28 = arith.constant 0 : index
    %c0_29 = arith.constant 0 : index
    %96 = vector.load %arg3[%c0_28, %c0_29] : memref<8x8xf32, #tpu.memory_space<vmem>>, vector<8x8xf32>
    tpu.vector_store %arg3[%c0_28, %c0_29], %95 {strides = array<i32>} : memref<8x8xf32, #tpu.memory_space<vmem>>, vector<8x8xf32>,
    return
  }
  func.func @transform_0(%arg0: i32) -> (i32, i32) {
    %c0_i32 = arith.constant 0 : i32
    %c0_i32_0 = arith.constant 0 : i32
    %c0_i32_1 = arith.constant 0 : i32
    return %c0_i32, %c0_i32_0 : i32, i32
  }
  func.func @transform_1(%arg0: i32) -> (i32, i32) {
    %c0_i32 = arith.constant 0 : i32
    %c0_i32_0 = arith.constant 0 : i32
    %c0_i32_1 = arith.constant 0 : i32
    return %c0_i32, %c0_i32_0 : i32, i32
  }
  func.func @transform_2(%arg0: i32) -> (i32, i32) {
    %c0_i32 = arith.constant 0 : i32
    %c0_i32_0 = arith.constant 0 : i32
    %c0_i32_1 = arith.constant 0 : i32
    return %c0_i32, %c0_i32_0 : i32, i32
  }
}

module attributes {stable_mosaic.version = 11 : i64} {
  func.func @_patch_embed_kernel(%arg0: i32, %arg1: i32, %arg2: i32, %arg3: memref<32x256xbf16, #tpu.memory_space<vmem>>, %arg4: memref<256x128xbf16, #tpu.memory_space<vmem>>, %arg5: memref<1x128xf32, #tpu.memory_space<vmem>>, %arg6: memref<32x128xf32, #tpu.memory_space<vmem>>, %arg7: memref<32x128xf32, #tpu.memory_space<vmem>>) attributes {dimension_semantics = [#tpu.dimension_semantics<parallel>, #tpu.dimension_semantics<parallel>, #tpu.dimension_semantics<arbitrary>], iteration_bounds = array<i64: 1, 1, 1>, scalar_prefetch = 0 : i64, scratch_operands = 1 : i64, tpu.core_type = #tpu.core_type<tc>, window_params = [{transform_indices = @transform_0, window_bounds = array<i64: 32, 256>}, {transform_indices = @transform_1, window_bounds = array<i64: 256, 128>}, {transform_indices = @transform_2, window_bounds = array<i64: 1, 128>}, {transform_indices = @transform_3, window_bounds = array<i64: 32, 128>}]} {
    %c0_i32 = arith.constant 0 : i32
    %0 = arith.cmpi eq, %arg2, %c0_i32 : i32
    %1 = arith.extui %0 : i1 to i32
    %c0_i32_0 = arith.constant 0 : i32
    %2 = arith.cmpi ne, %1, %c0_i32_0 : i32
    scf.if %2 {
      %cst_10 = arith.constant 0.000000e+00 : f32
      %12 = vector.broadcast %cst_10 : f32 to vector<32x128xf32>
      %c0_11 = arith.constant 0 : index
      %c0_12 = arith.constant 0 : index
      %13 = vector.load %arg7[%c0_11, %c0_12] : memref<32x128xf32, #tpu.memory_space<vmem>>, vector<32x128xf32>
      tpu.vector_store %arg7[%c0_11, %c0_12], %12 {strides = array<i32>} : memref<32x128xf32, #tpu.memory_space<vmem>>, vector<32x128xf32>,
    } else {
    }
    %c0 = arith.constant 0 : index
    %c0_1 = arith.constant 0 : index
    %3 = vector.load %arg7[%c0, %c0_1] : memref<32x128xf32, #tpu.memory_space<vmem>>, vector<32x128xf32>
    %c0_2 = arith.constant 0 : index
    %c0_3 = arith.constant 0 : index
    %4 = vector.load %arg3[%c0_2, %c0_3] : memref<32x256xbf16, #tpu.memory_space<vmem>>, vector<32x256xbf16>
    %c0_4 = arith.constant 0 : index
    %c0_5 = arith.constant 0 : index
    %5 = vector.load %arg4[%c0_4, %c0_5] : memref<256x128xbf16, #tpu.memory_space<vmem>>, vector<256x128xbf16>
    %cst = arith.constant dense<0.000000e+00> : vector<32x128xf32>
    %6 = tpu.matmul %4, %5, %cst {dimension_numbers = #tpu.dot_dimension_numbers<[1], [0], [0], [1], [0, 0, 1, 1], [], []>} : vector<32x256xbf16>, vector<256x128xbf16>, vector<32x128xf32> -> vector<32x128xf32>
    %7 = arith.addf %3, %6 : vector<32x128xf32>
    %c0_6 = arith.constant 0 : index
    %c0_7 = arith.constant 0 : index
    %8 = vector.load %arg7[%c0_6, %c0_7] : memref<32x128xf32, #tpu.memory_space<vmem>>, vector<32x128xf32>
    tpu.vector_store %arg7[%c0_6, %c0_7], %7 {strides = array<i32>} : memref<32x128xf32, #tpu.memory_space<vmem>>, vector<32x128xf32>,
    %c0_i32_8 = arith.constant 0 : i32
    %9 = arith.cmpi eq, %arg2, %c0_i32_8 : i32
    %10 = arith.extui %9 : i1 to i32
    %c0_i32_9 = arith.constant 0 : i32
    %11 = arith.cmpi ne, %10, %c0_i32_9 : i32
    scf.if %11 {
      %c0_10 = arith.constant 0 : index
      %c0_11 = arith.constant 0 : index
      %12 = vector.load %arg7[%c0_10, %c0_11] : memref<32x128xf32, #tpu.memory_space<vmem>>, vector<32x128xf32>
      %c0_12 = arith.constant 0 : index
      %c0_13 = arith.constant 0 : index
      %13 = vector.load %arg5[%c0_12, %c0_13] : memref<1x128xf32, #tpu.memory_space<vmem>>, vector<1x128xf32>
      %14 = vector.broadcast %13 : vector<1x128xf32> to vector<32x128xf32>
      %15 = arith.addf %12, %14 : vector<32x128xf32>
      %cst_14 = arith.constant 0.000000e+00 : f32
      %16 = vector.broadcast %cst_14 : f32 to vector<32x128xf32>
      %17 = arith.maximumf %15, %16 : vector<32x128xf32>
      %c0_15 = arith.constant 0 : index
      %c0_16 = arith.constant 0 : index
      %18 = vector.load %arg6[%c0_15, %c0_16] : memref<32x128xf32, #tpu.memory_space<vmem>>, vector<32x128xf32>
      tpu.vector_store %arg6[%c0_15, %c0_16], %17 {strides = array<i32>} : memref<32x128xf32, #tpu.memory_space<vmem>>, vector<32x128xf32>,
    } else {
    }
    return
  }
  func.func @transform_0(%arg0: i32, %arg1: i32, %arg2: i32) -> (i32, i32) {
    %c0_i32 = arith.constant 0 : i32
    return %arg0, %arg2 : i32, i32
  }
  func.func @transform_1(%arg0: i32, %arg1: i32, %arg2: i32) -> (i32, i32) {
    %c0_i32 = arith.constant 0 : i32
    return %arg2, %arg1 : i32, i32
  }
  func.func @transform_2(%arg0: i32, %arg1: i32, %arg2: i32) -> (i32, i32) {
    %c0_i32 = arith.constant 0 : i32
    %c0_i32_0 = arith.constant 0 : i32
    return %c0_i32, %arg1 : i32, i32
  }
  func.func @transform_3(%arg0: i32, %arg1: i32, %arg2: i32) -> (i32, i32) {
    %c0_i32 = arith.constant 0 : i32
    return %arg0, %arg1 : i32, i32
  }
}

</mosaic_0001>

<llo_original>
// kernel: div.8
$region0: #{div.8}
  %s0 = inlined_call_operand.vmem [shape: f32[3,16], index: 0, kind: input, shape index: {}]
  %s1 = inlined_call_operand.vmem [shape: f32[48], index: 1, kind: output, shape index: {}]
  $region1: #{div.8} parent=0
    #allocation0 [shape = 'u8[4096]{0}', space=vmem, size = 0x1000, scoped, tag = 'scoped mem for output reshape']
    #allocation1 [shape = 'u8[4096]{0}', space=vmem, size = 0x1000, scoped, tag = 'scoped mem for input reshape']
    %s3 = sshllo.u32 0, 4
    %v4 = vld [vmem:[%s0] sm:%s3]
    %5 = vst [vmem:[#allocation1] sm:%s3] %v4
    %v6 = vld [vmem:[#allocation1] sm:$0x1]
    %vm7 = vcmask 130048
    %8 = vst.msk [vmem:[#allocation0] sm:$0x1] %vm7, %v6
    %s9 = scalar_lea.vmem [#allocation1], 2
    %v10 = vld [vmem:[%s9] sm:$0x1]
    %11 = vrot.lane.b32.xlu0 %v10, 32
    %v12 = vpop.permute.xlu0 %11
    %vm13 = vcmask 392448
    %14 = vst.msk [vmem:[#allocation0] sm:$0x1] %vm13, %v12
    %s15 = scalar_lea.vmem [#allocation1], 1
    %v16 = vld [vmem:[%s15] sm:$0x1]
    %17 = vrot.lane.b32.xlu0 %v16, 16
    %v18 = vpop.permute.xlu0 %17
    %vm19 = vcmask 261248
    %20 = vst.msk [vmem:[#allocation0] sm:$0x1] %vm19, %v18
    %s22 = sshllo.u32 0, 1
    %v24 = vld [vmem:[#allocation0] sm:%s22]
    %s25 = sshllo.u32 0, 1
    %26 = vst [vmem:[%s1] sm:%s25] %v24

// kernel: div.2
$region0: #{div.2}
  #allocation0 [shape = 's32[1]{0}', space=sflag, size = 0x4, scoped, tag = 'scoped memory for div.2']
  %s0 = inlined_call_operand.vmem [shape: f32[48], index: 0, kind: input, shape index: {}]
  %s1 = inlined_call_operand.vmem [shape: f32[48], index: 1, kind: input, shape index: {}]
  %s2 = inlined_call_operand.vmem [shape: f32[48], index: 2, kind: output, shape index: {}]
  %v3 = vld [vmem:[%s0] sm:$0x1]
  %v4 = vld [vmem:[%s1] sm:$0x1]
  %5 = xla_tuple %v3, %v4
  %6 = xla_tuple %5
  %v7 = vrcp.pop %v4
  %v8 = vmul.f32 %v3, %v7
  %9 = xla_tuple %v8
  %10 = vst [vmem:[%s2] sm:$0x1] %v8

// kernel: _lambda_.3
$region0: #{_lambda_.3}
  #allocation0 [shape = 'u32[]', space=smem, size = 0x4, offset = 0x4, fixed_abs, tag = 'smem constant byte address 0x4 - core index']
  #allocation1 [shape = 'u32[144,128]{1,0:T(1,128)}', space=vmem, size = 0x12000, scoped, tag = 'internal scratch']
  #allocation2 [shape = 'f32[128,128]{1,0:T(8,128)}', space=vmem, size = 0x10000, scoped, tag = 'scratch operand']
  %s0 = inlined_call_operand.vmem [shape: bf16[128,128], index: 0, kind: input, shape index: {}]
  %s1 = inlined_call_operand.vmem [shape: bf16[128,128], index: 1, kind: input, shape index: {}]
  %s2 = inlined_call_operand.vmem [shape: f32[1,128], index: 2, kind: input, shape index: {}]
  %s3 = inlined_call_operand.vmem [shape: f32[128,128], index: 3, kind: output, shape index: {}]
  %s4 = sld [smem:[#allocation0]]
  $region30: #{_lambda_.3} parent=0
    _
  %s6 = ssub.s32 1, %s4
  %s7 = scalar_select 0, %s6, %s4
  // Predicated region
  $region2: #{_lambda_.3} parent=0 // pred_check
    _
  $region3: #{_lambda_.3} parent=0 // pred_check_branch
    %9 = sbr.rel (0) target = $region5
  $region4: #{_lambda_.3} parent=0 // pred_region
    _
  $region5: #{_lambda_.3} parent=0 // pred_fallthru
    _
  // Predicated region
  $region6: #{_lambda_.3} parent=0 // pred_check
    _
  $region7: #{_lambda_.3} parent=0 // pred_check_branch
    %11 = sbr.rel (0) target = $region9
  $region8: #{_lambda_.3} parent=0 // pred_region
    _
  $region9: #{_lambda_.3} parent=0 // pred_fallthru
    _
  // Predicated region
  $region10: #{_lambda_.3} parent=0 // pred_check
    _
  $region11: #{_lambda_.3} parent=0 // pred_check_branch
    %13 = sbr.rel (0) target = $region13
  $region12: #{_lambda_.3} parent=0 // pred_region
    _
  $region13: #{_lambda_.3} parent=0 // pred_fallthru
    _
  %p15 = scmp.eq.s32.totalorder 0, 0
  // Predicated region
  $region14: #{_lambda_.3} parent=0 // pred_check
    %p16 = pneg %p15
  $region15: #{_lambda_.3} parent=0 // pred_check_branch
    %18 = sbr.rel (%p16) target = $region17
  $region16: #{_lambda_.3} parent=0 // pred_region
    %19 = vst [vmem:[#allocation2] sm:$0xff] 0.0
    %20 = vst [vmem:[#allocation2 + $0x8] sm:$0xff] 0.0
    %21 = vst [vmem:[#allocation2 + $0x10] sm:$0xff] 0.0
    %22 = vst [vmem:[#allocation2 + $0x18] sm:$0xff] 0.0
    %23 = vst [vmem:[#allocation2 + $0x20] sm:$0xff] 0.0
    %24 = vst [vmem:[#allocation2 + $0x28] sm:$0xff] 0.0
    %25 = vst [vmem:[#allocation2 + $0x30] sm:$0xff] 0.0
    %26 = vst [vmem:[#allocation2 + $0x38] sm:$0xff] 0.0
    %27 = vst [vmem:[#allocation2 + $0x40] sm:$0xff] 0.0
    %28 = vst [vmem:[#allocation2 + $0x48] sm:$0xff] 0.0
    %29 = vst [vmem:[#allocation2 + $0x50] sm:$0xff] 0.0
    %30 = vst [vmem:[#allocation2 + $0x58] sm:$0xff] 0.0
    %31 = vst [vmem:[#allocation2 + $0x60] sm:$0xff] 0.0
    %32 = vst [vmem:[#allocation2 + $0x68] sm:$0xff] 0.0
    %33 = vst [vmem:[#allocation2 + $0x70] sm:$0xff] 0.0
    %34 = vst [vmem:[#allocation2 + $0x78] sm:$0xff] 0.0
  $region17: #{_lambda_.3} parent=0 // pred_fallthru
    _
  %v35 = vld [vmem:[#allocation2] sm:$0xff]
  %v36 = vld [vmem:[#allocation2 + $0x8] sm:$0xff]
  %v37 = vld [vmem:[#allocation2 + $0x10] sm:$0xff]
  %v38 = vld [vmem:[#allocation2 + $0x18] sm:$0xff]
  %v39 = vld [vmem:[#allocation2 + $0x20] sm:$0xff]
  %v40 = vld [vmem:[#allocation2 + $0x28] sm:$0xff]
  %v41 = vld [vmem:[#allocation2 + $0x30] sm:$0xff]
  %v42 = vld [vmem:[#allocation2 + $0x38] sm:$0xff]
  %v43 = vld [vmem:[#allocation2 + $0x40] sm:$0xff]
  %v44 = vld [vmem:[#allocation2 + $0x48] sm:$0xff]
  %v45 = vld [vmem:[#allocation2 + $0x50] sm:$0xff]
  %v46 = vld [vmem:[#allocation2 + $0x58] sm:$0xff]
  %v47 = vld [vmem:[#allocation2 + $0x60] sm:$0xff]
  %v48 = vld [vmem:[#allocation2 + $0x68] sm:$0xff]
  %v49 = vld [vmem:[#allocation2 + $0x70] sm:$0xff]
  %v50 = vld [vmem:[#allocation2 + $0x78] sm:$0xff]
  %v51 = vld [vmem:[%s0] sm:$0xf]
  %v52 = vld [vmem:[%s0 + $0x4] sm:$0xf]
  %v53 = vld [vmem:[%s0 + $0x8] sm:$0xf]
  %v54 = vld [vmem:[%s0 + $0xc] sm:$0xf]
  %v55 = vld [vmem:[%s0 + $0x10] sm:$0xf]
  %v56 = vld [vmem:[%s0 + $0x14] sm:$0xf]
  %v57 = vld [vmem:[%s0 + $0x18] sm:$0xf]
  %v58 = vld [vmem:[%s0 + $0x1c] sm:$0xf]
  %v59 = vld [vmem:[%s0 + $0x20] sm:$0xf]
  %v60 = vld [vmem:[%s0 + $0x24] sm:$0xf]
  %v61 = vld [vmem:[%s0 + $0x28] sm:$0xf]
  %v62 = vld [vmem:[%s0 + $0x2c] sm:$0xf]
  %v63 = vld [vmem:[%s0 + $0x30] sm:$0xf]
  %v64 = vld [vmem:[%s0 + $0x34] sm:$0xf]
  %v65 = vld [vmem:[%s0 + $0x38] sm:$0xf]
  %v66 = vld [vmem:[%s0 + $0x3c] sm:$0xf]
  %v67 = vld [vmem:[%s1] sm:$0xf]
  %v68 = vld [vmem:[%s1 + $0x4] sm:$0xf]
  %v69 = vld [vmem:[%s1 + $0x8] sm:$0xf]
  %v70 = vld [vmem:[%s1 + $0xc] sm:$0xf]
  %v71 = vld [vmem:[%s1 + $0x10] sm:$0xf]
  %v72 = vld [vmem:[%s1 + $0x14] sm:$0xf]
  %v73 = vld [vmem:[%s1 + $0x18] sm:$0xf]
  %v74 = vld [vmem:[%s1 + $0x1c] sm:$0xf]
  %v75 = vld [vmem:[%s1 + $0x20] sm:$0xf]
  %v76 = vld [vmem:[%s1 + $0x24] sm:$0xf]
  %v77 = vld [vmem:[%s1 + $0x28] sm:$0xf]
  %v78 = vld [vmem:[%s1 + $0x2c] sm:$0xf]
  %v79 = vld [vmem:[%s1 + $0x30] sm:$0xf]
  %v80 = vld [vmem:[%s1 + $0x34] sm:$0xf]
  %v81 = vld [vmem:[%s1 + $0x38] sm:$0xf]
  %v82 = vld [vmem:[%s1 + $0x3c] sm:$0xf]
  %v99 = vunpack.c.l.b16 %v51
  %v100 = vunpack.c.l.b16 %v52
  %v101 = vunpack.c.l.b16 %v53
  %v102 = vunpack.c.l.b16 %v54
  %v103 = vunpack.c.l.b16 %v55
  %v104 = vunpack.c.l.b16 %v56
  %v105 = vunpack.c.l.b16 %v57
  %v106 = vunpack.c.l.b16 %v58
  %v107 = vunpack.c.l.b16 %v59
  %v108 = vunpack.c.l.b16 %v60
  %v109 = vunpack.c.l.b16 %v61
  %v110 = vunpack.c.l.b16 %v62
  %v111 = vunpack.c.l.b16 %v63
  %v112 = vunpack.c.l.b16 %v64
  %v113 = vunpack.c.l.b16 %v65
  %v114 = vunpack.c.l.b16 %v66
  %v115 = vpack.c.b16 %v100, %v99
  %v116 = vpack.c.b16 %v102, %v101
  %v117 = vpack.c.b16 %v104, %v103
  %v118 = vpack.c.b16 %v106, %v105
  %v119 = vpack.c.b16 %v108, %v107
  %v120 = vpack.c.b16 %v110, %v109
  %v121 = vpack.c.b16 %v112, %v111
  %v122 = vpack.c.b16 %v114, %v113
  %v147 = vunpack.c.l.b16 %v67
  %v148 = vunpack.c.l.b16 %v68
  %v149 = vunpack.c.l.b16 %v69
  %v150 = vunpack.c.l.b16 %v70
  %v151 = vunpack.c.l.b16 %v71
  %v152 = vunpack.c.l.b16 %v72
  %v153 = vunpack.c.l.b16 %v73
  %v154 = vunpack.c.l.b16 %v74
  %v155 = vunpack.c.l.b16 %v75
  %v156 = vunpack.c.l.b16 %v76
  %v157 = vunpack.c.l.b16 %v77
  %v158 = vunpack.c.l.b16 %v78
  %v159 = vunpack.c.l.b16 %v79
  %v160 = vunpack.c.l.b16 %v80
  %v161 = vunpack.c.l.b16 %v81
  %v162 = vunpack.c.l.b16 %v82
  %v163 = vpack.c.b16 %v148, %v147
  %v164 = vpack.c.b16 %v150, %v149
  %v165 = vpack.c.b16 %v152, %v151
  %v166 = vpack.c.b16 %v154, %v153
  %v167 = vpack.c.b16 %v156, %v155
  %v168 = vpack.c.b16 %v158, %v157
  %v169 = vpack.c.b16 %v160, %v159
  %v170 = vpack.c.b16 %v162, %v161
  %179 = vmatprep.subr.bf16.mxu0 0
  %180 = vmatpush1.bf16.msra.mxu0 %v163
  %181 = vmatprep.subr.bf16.mxu0 0
  %182 = vmatpush1.bf16.msra.mxu0 %v164
  %183 = vmatprep.subr.bf16.mxu0 0
  %184 = vmatpush1.bf16.msra.mxu0 %v165
  %185 = vmatprep.subr.bf16.mxu0 0
  %186 = vmatpush1.bf16.msra.mxu0 %v166
  %187 = vmatprep.subr.bf16.mxu0 0
  %188 = vmatpush1.bf16.msra.mxu0 %v167
  %189 = vmatprep.subr.bf16.mxu0 0
  %190 = vmatpush1.bf16.msra.mxu0 %v168
  %191 = vmatprep.subr.bf16.mxu0 0
  %192 = vmatpush1.bf16.msra.mxu0 %v169
  %193 = vmatprep.subr.bf16.mxu0 0
  %194 = vmatpush1.bf16.msra.mxu0 %v170
  %195 = vmatprep.subr.bf16.mxu0 0
  %196 = vmatpush1.bf16.msra.mxu0 0
  %197 = vmatprep.subr.bf16.mxu0 0
  %198 = vmatpush1.bf16.msra.mxu0 0
  %199 = vmatprep.subr.bf16.mxu0 0
  %200 = vmatpush1.bf16.msra.mxu0 0
  %201 = vmatprep.subr.bf16.mxu0 0
  %202 = vmatpush1.bf16.msra.mxu0 0
  %203 = vmatprep.subr.bf16.mxu0 0
  %204 = vmatpush1.bf16.msra.mxu0 0
  %205 = vmatprep.subr.bf16.mxu0 0
  %206 = vmatpush1.bf16.msra.mxu0 0
  %207 = vmatprep.subr.bf16.mxu0 0
  %208 = vmatpush1.bf16.msra.mxu0 0
  %209 = vmatprep.subr.bf16.mxu0 0
  %210 = vmatpush1.bf16.msra.mxu0 0
  %211 = vmatprep.mubr.bf16.mxu0 0
  %212 = vmatmul.mubr.bf16.gmra.mrb[0].mxu0 %v115
  %v213 = vpop.f32.mrb[0].mxu0
  %v214 = vadd.f32 0.0, %v213
  %v215 = vpop.f32.mrb[0].mxu0
  %v216 = vpop.f32.mrb[0].mxu0
  %v217 = vadd.f32 0.0, %v216
  %v218 = vpop.f32.mrb[0].mxu0
  %219 = vmatprep.mubr.bf16.mxu0 0
  %220 = vmatmul.mubr.bf16.gmra.mrb[0].mxu0 %v116
  %v221 = vpop.f32.mrb[0].mxu0
  %v222 = vadd.f32 0.0, %v221
  %v223 = vpop.f32.mrb[0].mxu0
  %v224 = vpop.f32.mrb[0].mxu0
  %v225 = vadd.f32 0.0, %v224
  %v226 = vpop.f32.mrb[0].mxu0
  %227 = vmatprep.mubr.bf16.mxu0 0
  %228 = vmatmul.mubr.bf16.gmra.mrb[0].mxu0 %v117
  %v229 = vpop.f32.mrb[0].mxu0
  %v230 = vadd.f32 0.0, %v229
  %v231 = vpop.f32.mrb[0].mxu0
  %v232 = vpop.f32.mrb[0].mxu0
  %v233 = vadd.f32 0.0, %v232
  %v234 = vpop.f32.mrb[0].mxu0
  %235 = vmatprep.mubr.bf16.mxu0 0
  %236 = vmatmul.mubr.bf16.gmra.mrb[0].mxu0 %v118
  %v237 = vpop.f32.mrb[0].mxu0
  %v238 = vadd.f32 0.0, %v237
  %v239 = vpop.f32.mrb[0].mxu0
  %v240 = vpop.f32.mrb[0].mxu0
  %v241 = vadd.f32 0.0, %v240
  %v242 = vpop.f32.mrb[0].mxu0
  %243 = vmatprep.mubr.bf16.mxu0 0
  %244 = vmatmul.mubr.bf16.gmra.mrb[0].mxu0 %v119
  %v245 = vpop.f32.mrb[0].mxu0
  %v246 = vadd.f32 0.0, %v245
  %v247 = vpop.f32.mrb[0].mxu0
  %v248 = vpop.f32.mrb[0].mxu0
  %v249 = vadd.f32 0.0, %v248
  %v250 = vpop.f32.mrb[0].mxu0
  %251 = vmatprep.mubr.bf16.mxu0 0
  %252 = vmatmul.mubr.bf16.gmra.mrb[0].mxu0 %v120
  %v253 = vpop.f32.mrb[0].mxu0
  %v254 = vadd.f32 0.0, %v253
  %v255 = vpop.f32.mrb[0].mxu0
  %v256 = vpop.f32.mrb[0].mxu0
  %v257 = vadd.f32 0.0, %v256
  %v258 = vpop.f32.mrb[0].mxu0
  %259 = vmatprep.mubr.bf16.mxu0 0
  %260 = vmatmul.mubr.bf16.gmra.mrb[0].mxu0 %v121
  %v261 = vpop.f32.mrb[0].mxu0
  %v262 = vadd.f32 0.0, %v261
  %v263 = vpop.f32.mrb[0].mxu0
  %v264 = vpop.f32.mrb[0].mxu0
  %v265 = vadd.f32 0.0, %v264
  %v266 = vpop.f32.mrb[0].mxu0
  %267 = vmatprep.mubr.bf16.mxu0 0
  %268 = vmatmul.mubr.bf16.gmra.mrb[0].mxu0 %v122
  %v269 = vpop.f32.mrb[0].mxu0
  %v270 = vadd.f32 0.0, %v269
  %v271 = vpop.f32.mrb[0].mxu0
  %v272 = vpop.f32.mrb[0].mxu0
  %v273 = vadd.f32 0.0, %v272
  %v274 = vpop.f32.mrb[0].mxu0
  %275 = vdwg.mxu0
  %v276 = vadd.f32 %v35, %v214
  %v277 = vadd.f32 %v36, %v217
  %v278 = vadd.f32 %v37, %v222
  %v279 = vadd.f32 %v38, %v225
  %v280 = vadd.f32 %v39, %v230
  %v281 = vadd.f32 %v40, %v233
  %v282 = vadd.f32 %v41, %v238
  %v283 = vadd.f32 %v42, %v241
  %v284 = vadd.f32 %v43, %v246
  %v285 = vadd.f32 %v44, %v249
  %v286 = vadd.f32 %v45, %v254
  %v287 = vadd.f32 %v46, %v257
  %v288 = vadd.f32 %v47, %v262
  %v289 = vadd.f32 %v48, %v265
  %v290 = vadd.f32 %v49, %v270
  %v291 = vadd.f32 %v50, %v273
  %292 = vst [vmem:[#allocation2] sm:$0xff] %v276
  %293 = vst [vmem:[#allocation2 + $0x8] sm:$0xff] %v277
  %294 = vst [vmem:[#allocation2 + $0x10] sm:$0xff] %v278
  %295 = vst [vmem:[#allocation2 + $0x18] sm:$0xff] %v279
  %296 = vst [vmem:[#allocation2 + $0x20] sm:$0xff] %v280
  %297 = vst [vmem:[#allocation2 + $0x28] sm:$0xff] %v281
  %298 = vst [vmem:[#allocation2 + $0x30] sm:$0xff] %v282
  %299 = vst [vmem:[#allocation2 + $0x38] sm:$0xff] %v283
  %300 = vst [vmem:[#allocation2 + $0x40] sm:$0xff] %v284
  %301 = vst [vmem:[#allocation2 + $0x48] sm:$0xff] %v285
  %302 = vst [vmem:[#allocation2 + $0x50] sm:$0xff] %v286
  %303 = vst [vmem:[#allocation2 + $0x58] sm:$0xff] %v287
  %304 = vst [vmem:[#allocation2 + $0x60] sm:$0xff] %v288
  %305 = vst [vmem:[#allocation2 + $0x68] sm:$0xff] %v289
  %306 = vst [vmem:[#allocation2 + $0x70] sm:$0xff] %v290
  %307 = vst [vmem:[#allocation2 + $0x78] sm:$0xff] %v291
  // Predicated region
  $region18: #{_lambda_.3} parent=0 // pred_check
    %p308 = pneg %p15
  $region19: #{_lambda_.3} parent=0 // pred_check_branch
    %310 = sbr.rel (%p308) target = $region21
  $region20: #{_lambda_.3} parent=0 // pred_region
    %v311 = vld [vmem:[#allocation2] sm:$0xff]
    %v312 = vld [vmem:[#allocation2 + $0x8] sm:$0xff]
    %v313 = vld [vmem:[#allocation2 + $0x10] sm:$0xff]
    %v314 = vld [vmem:[#allocation2 + $0x18] sm:$0xff]
    %v315 = vld [vmem:[#allocation2 + $0x20] sm:$0xff]
    %v316 = vld [vmem:[#allocation2 + $0x28] sm:$0xff]
    %v317 = vld [vmem:[#allocation2 + $0x30] sm:$0xff]
    %v318 = vld [vmem:[#allocation2 + $0x38] sm:$0xff]
    %v319 = vld [vmem:[#allocation2 + $0x40] sm:$0xff]
    %v320 = vld [vmem:[#allocation2 + $0x48] sm:$0xff]
    %v321 = vld [vmem:[#allocation2 + $0x50] sm:$0xff]
    %v322 = vld [vmem:[#allocation2 + $0x58] sm:$0xff]
    %v323 = vld [vmem:[#allocation2 + $0x60] sm:$0xff]
    %v324 = vld [vmem:[#allocation2 + $0x68] sm:$0xff]
    %v325 = vld [vmem:[#allocation2 + $0x70] sm:$0xff]
    %v326 = vld [vmem:[#allocation2 + $0x78] sm:$0xff]
    %v327 = vld [vmem:[%s2] sm:$0x1]
    %v329 = vlaneseq
    %v330 = vshrl.u32 %v329, 7
    %v331 = vsub.s32 0, %v330
    %v332 = vrot.slane %v327, %v331
    %v334 = vadd.f32 %v311, %v332
    %v335 = vadd.f32 %v312, %v332
    %v336 = vadd.f32 %v313, %v332
    %v337 = vadd.f32 %v314, %v332
    %v338 = vadd.f32 %v315, %v332
    %v339 = vadd.f32 %v316, %v332
    %v340 = vadd.f32 %v317, %v332
    %v341 = vadd.f32 %v318, %v332
    %v342 = vadd.f32 %v319, %v332
    %v343 = vadd.f32 %v320, %v332
    %v344 = vadd.f32 %v321, %v332
    %v345 = vadd.f32 %v322, %v332
    %v346 = vadd.f32 %v323, %v332
    %v347 = vadd.f32 %v324, %v332
    %v348 = vadd.f32 %v325, %v332
    %v349 = vadd.f32 %v326, %v332
    %v350 = vmax.f32 %v334, 0.0
    %v351 = vmax.f32 %v335, 0.0
    %v352 = vmax.f32 %v336, 0.0
    %v353 = vmax.f32 %v337, 0.0
    %v354 = vmax.f32 %v338, 0.0
    %v355 = vmax.f32 %v339, 0.0
    %v356 = vmax.f32 %v340, 0.0
    %v357 = vmax.f32 %v341, 0.0
    %v358 = vmax.f32 %v342, 0.0
    %v359 = vmax.f32 %v343, 0.0
    %v360 = vmax.f32 %v344, 0.0
    %v361 = vmax.f32 %v345, 0.0
    %v362 = vmax.f32 %v346, 0.0
    %v363 = vmax.f32 %v347, 0.0
    %v364 = vmax.f32 %v348, 0.0
    %v365 = vmax.f32 %v349, 0.0
    %366 = vst [vmem:[%s3] sm:$0xff] %v350
    %367 = vst [vmem:[%s3 + $0x8] sm:$0xff] %v351
    %368 = vst [vmem:[%s3 + $0x10] sm:$0xff] %v352
    %369 = vst [vmem:[%s3 + $0x18] sm:$0xff] %v353
    %370 = vst [vmem:[%s3 + $0x20] sm:$0xff] %v354
    %371 = vst [vmem:[%s3 + $0x28] sm:$0xff] %v355
    %372 = vst [vmem:[%s3 + $0x30] sm:$0xff] %v356
    %373 = vst [vmem:[%s3 + $0x38] sm:$0xff] %v357
    %374 = vst [vmem:[%s3 + $0x40] sm:$0xff] %v358
    %375 = vst [vmem:[%s3 + $0x48] sm:$0xff] %v359
    %376 = vst [vmem:[%s3 + $0x50] sm:$0xff] %v360
    %377 = vst [vmem:[%s3 + $0x58] sm:$0xff] %v361
    %378 = vst [vmem:[%s3 + $0x60] sm:$0xff] %v362
    %379 = vst [vmem:[%s3 + $0x68] sm:$0xff] %v363
    %380 = vst [vmem:[%s3 + $0x70] sm:$0xff] %v364
    %381 = vst [vmem:[%s3 + $0x78] sm:$0xff] %v365
  $region21: #{_lambda_.3} parent=0 // pred_fallthru
    _
  // Predicated region
  $region22: #{_lambda_.3} parent=0 // pred_check
    _
  $region23: #{_lambda_.3} parent=0 // pred_check_branch
    %383 = sbr.rel (0) target = $region25
  $region24: #{_lambda_.3} parent=0 // pred_region
    _
  $region25: #{_lambda_.3} parent=0 // pred_fallthru
    _
  // Predicated region
  $region26: #{_lambda_.3} parent=0 // pred_check
    _
  $region27: #{_lambda_.3} parent=0 // pred_check_branch
    %385 = sbr.rel (0) target = $region29
  $region28: #{_lambda_.3} parent=0 // pred_region
    _
  $region29: #{_lambda_.3} parent=0 // pred_fallthru
    _

// kernel: _lambda_.5
$region0: #{_lambda_.5}
  #allocation0 [shape = 'u32[]', space=smem, size = 0x4, offset = 0x4, fixed_abs, tag = 'smem constant byte address 0x4 - core index']
  #allocation1 [shape = 'u32[144,128]{1,0:T(1,128)}', space=vmem, size = 0x12000, scoped, tag = 'internal scratch']
  %s0 = inlined_call_operand.vmem [shape: f32[8,2048], index: 0, kind: input, shape index: {}]
  %s1 = inlined_call_operand.vmem [shape: f32[8,512], index: 1, kind: input, shape index: {}]
  %s2 = inlined_call_operand.hbm [shape: f32[8,8], index: 2, kind: output, shape index: {}]
  %s3 = sld [smem:[#allocation0]]
  $region18: #{_lambda_.5} parent=0
    _
  %s5 = ssub.s32 1, %s3
  %s6 = scalar_select 0, %s5, %s3
  $region1: #{_lambda_.5} parent=0
    #allocation2 [shape = 'u8[4096]{0}', space=vmem, size = 0x1000, scoped, tag = 'output window, operand 0, single buffered']
    #allocation3 [shape = 's32[1]{0}', space=sflag, size = 0x4, scoped, tag = 'scoped memory for _lambda_.5']
    %7 = vsyncpa [#allocation3], 0
    // Predicated region
    $region2: #{_lambda_.5} parent=1 // pred_check
      _
    $region3: #{_lambda_.5} parent=1 // pred_check_branch
      %9 = sbr.rel (0) target = $region5
    $region4: #{_lambda_.5} parent=1 // pred_region
      _
    $region5: #{_lambda_.5} parent=1 // pred_fallthru
      _
    // Predicated region
    $region6: #{_lambda_.5} parent=1 // pred_check
      _
    $region7: #{_lambda_.5} parent=1 // pred_check_branch
      %11 = sbr.rel (0) target = $region9
    $region8: #{_lambda_.5} parent=1 // pred_region
      _
    $region9: #{_lambda_.5} parent=1 // pred_fallthru
      _
    %v12 = vld [vmem:[%s0] sm:$0xff]
    %v13 = vld [vmem:[%s0 + $0x8] sm:$0xff]
    %v14 = vld [vmem:[%s0 + $0x10] sm:$0xff]
    %v15 = vld [vmem:[%s0 + $0x18] sm:$0xff]
    %v16 = vld [vmem:[%s0 + $0x20] sm:$0xff]
    %v17 = vld [vmem:[%s0 + $0x28] sm:$0xff]
    %v18 = vld [vmem:[%s0 + $0x30] sm:$0xff]
    %v19 = vld [vmem:[%s0 + $0x38] sm:$0xff]
    %v20 = vld [vmem:[%s0 + $0x40] sm:$0xff]
    %v21 = vld [vmem:[%s0 + $0x48] sm:$0xff]
    %v22 = vld [vmem:[%s0 + $0x50] sm:$0xff]
    %v23 = vld [vmem:[%s0 + $0x58] sm:$0xff]
    %v24 = vld [vmem:[%s0 + $0x60] sm:$0xff]
    %v25 = vld [vmem:[%s0 + $0x68] sm:$0xff]
    %v26 = vld [vmem:[%s0 + $0x70] sm:$0xff]
    %v27 = vld [vmem:[%s0 + $0x78] sm:$0xff]
    %28 = vmatprep.subr.mxu0 %v13
    %29 = vmatpush1.xpose.msra.mxu0 %v12
    %30 = vmatprep.subr.mxu0 0.0
    %31 = vmatpush1.xpose.msra.mxu0 0.0
    %32 = vmatprep.subr.mxu0 0.0
    %33 = vmatpush1.xpose.msra.mxu0 0.0
    %34 = vmatprep.subr.mxu0 0.0
    %35 = vmatpush1.xpose.msra.mxu0 0.0
    %36 = vmatprep.subr.mxu0 0.0
    %37 = vmatpush1.xpose.msra.mxu0 0.0
    %38 = vmatprep.subr.mxu0 0.0
    %39 = vmatpush1.xpose.msra.mxu0 0.0
    %40 = vmatprep.subr.mxu0 0.0
    %41 = vmatpush1.xpose.msra.mxu0 0.0
    %42 = vmatprep.subr.mxu0 0.0
    %43 = vmatpush1.xpose.msra.mxu0 0.0
    %44 = vmatprep.subr.mxu0 0.0
    %45 = vmatpush1.xpose.msra.mxu0 0.0
    %46 = vmatprep.subr.mxu0 0.0
    %47 = vmatpush1.xpose.msra.mxu0 0.0
    %48 = vmatprep.subr.mxu0 0.0
    %49 = vmatpush1.xpose.msra.mxu0 0.0
    %50 = vmatprep.subr.mxu0 0.0
    %51 = vmatpush1.xpose.msra.mxu0 0.0
    %52 = vmatprep.subr.mxu0 0.0
    %53 = vmatpush1.xpose.msra.mxu0 0.0
    %54 = vmatprep.subr.mxu0 0.0
    %55 = vmatpush1.xpose.msra.mxu0 0.0
    %56 = vmatprep.subr.mxu0 0.0
    %57 = vmatpush1.xpose.msra.mxu0 0.0
    %58 = vmatprep.subr.mxu0 0.0
    %59 = vmatpush1.xpose.msra.mxu0 0.0
    %60 = vmatprep.subr.mxu0 0.0
    %61 = vmatpush1.xpose.msra.mxu0 0.0
    %62 = vmatprep.subr.mxu0 0.0
    %63 = vmatpush1.xpose.msra.mxu0 0.0
    %64 = vmatprep.subr.mxu0 0.0
    %65 = vmatpush1.xpose.msra.mxu0 0.0
    %66 = vmatprep.subr.mxu0 0.0
    %67 = vmatpush1.xpose.msra.mxu0 0.0
    %68 = vmatprep.subr.mxu0 0.0
    %69 = vmatpush1.xpose.msra.mxu0 0.0
    %70 = vmatprep.subr.mxu0 0.0
    %71 = vmatpush1.xpose.msra.mxu0 0.0
    %72 = vmatprep.subr.mxu0 0.0
    %73 = vmatpush1.xpose.msra.mxu0 0.0
    %74 = vmatprep.subr.mxu0 0.0
    %75 = vmatpush1.xpose.msra.mxu0 0.0
    %76 = vmatprep.subr.mxu0 0.0
    %77 = vmatpush1.xpose.msra.mxu0 0.0
    %78 = vmatprep.subr.mxu0 0.0
    %79 = vmatpush1.xpose.msra.mxu0 0.0
    %80 = vmatprep.subr.mxu0 0.0
    %81 = vmatpush1.xpose.msra.mxu0 0.0
    %82 = vmatprep.subr.mxu0 0.0
    %83 = vmatpush1.xpose.msra.mxu0 0.0
    %84 = vmatprep.subr.mxu0 0.0
    %85 = vmatpush1.xpose.msra.mxu0 0.0
    %86 = vmatprep.subr.mxu0 0.0
    %87 = vmatpush1.xpose.msra.mxu0 0.0
    %88 = vmatprep.subr.mxu0 0.0
    %89 = vmatpush1.xpose.msra.mxu0 0.0
    %90 = vmatprep.subr.mxu0 0.0
    %91 = vmatpush1.xpose.msra.mxu0 0.0
    %92 = vmatprep.mubr.f32.mxu0 %v13
    %93 = vmatmul.mubr.f32.gmra.mrb[0].mxu0 %v12
    %v94 = vpop.f32.mrb[0].mxu0
    %v95 = vadd.f32 0.0, %v94
    %v96 = vpop.f32.mrb[0].mxu0
    %97 = vdwg.mxu0
    %98 = vmatprep.subr.mxu0 %v15
    %99 = vmatpush1.xpose.msra.mxu0 %v14
    %100 = vmatprep.subr.mxu0 0.0
    %101 = vmatpush1.xpose.msra.mxu0 0.0
    %102 = vmatprep.subr.mxu0 0.0
    %103 = vmatpush1.xpose.msra.mxu0 0.0
    %104 = vmatprep.subr.mxu0 0.0
    %105 = vmatpush1.xpose.msra.mxu0 0.0
    %106 = vmatprep.subr.mxu0 0.0
    %107 = vmatpush1.xpose.msra.mxu0 0.0
    %108 = vmatprep.subr.mxu0 0.0
    %109 = vmatpush1.xpose.msra.mxu0 0.0
    %110 = vmatprep.subr.mxu0 0.0
    %111 = vmatpush1.xpose.msra.mxu0 0.0
    %112 = vmatprep.subr.mxu0 0.0
    %113 = vmatpush1.xpose.msra.mxu0 0.0
    %114 = vmatprep.subr.mxu0 0.0
    %115 = vmatpush1.xpose.msra.mxu0 0.0
    %116 = vmatprep.subr.mxu0 0.0
    %117 = vmatpush1.xpose.msra.mxu0 0.0
    %118 = vmatprep.subr.mxu0 0.0
    %119 = vmatpush1.xpose.msra.mxu0 0.0
    %120 = vmatprep.subr.mxu0 0.0
    %121 = vmatpush1.xpose.msra.mxu0 0.0
    %122 = vmatprep.subr.mxu0 0.0
    %123 = vmatpush1.xpose.msra.mxu0 0.0
    %124 = vmatprep.subr.mxu0 0.0
    %125 = vmatpush1.xpose.msra.mxu0 0.0
    %126 = vmatprep.subr.mxu0 0.0
    %127 = vmatpush1.xpose.msra.mxu0 0.0
    %128 = vmatprep.subr.mxu0 0.0
    %129 = vmatpush1.xpose.msra.mxu0 0.0
    %130 = vmatprep.subr.mxu0 0.0
    %131 = vmatpush1.xpose.msra.mxu0 0.0
    %132 = vmatprep.subr.mxu0 0.0
    %133 = vmatpush1.xpose.msra.mxu0 0.0
    %134 = vmatprep.subr.mxu0 0.0
    %135 = vmatpush1.xpose.msra.mxu0 0.0
    %136 = vmatprep.subr.mxu0 0.0
    %137 = vmatpush1.xpose.msra.mxu0 0.0
    %138 = vmatprep.subr.mxu0 0.0
    %139 = vmatpush1.xpose.msra.mxu0 0.0
    %140 = vmatprep.subr.mxu0 0.0
    %141 = vmatpush1.xpose.msra.mxu0 0.0
    %142 = vmatprep.subr.mxu0 0.0
    %143 = vmatpush1.xpose.msra.mxu0 0.0
    %144 = vmatprep.subr.mxu0 0.0
    %145 = vmatpush1.xpose.msra.mxu0 0.0
    %146 = vmatprep.subr.mxu0 0.0
    %147 = vmatpush1.xpose.msra.mxu0 0.0
    %148 = vmatprep.subr.mxu0 0.0
    %149 = vmatpush1.xpose.msra.mxu0 0.0
    %150 = vmatprep.subr.mxu0 0.0
    %151 = vmatpush1.xpose.msra.mxu0 0.0
    %152 = vmatprep.subr.mxu0 0.0
    %153 = vmatpush1.xpose.msra.mxu0 0.0
    %154 = vmatprep.subr.mxu0 0.0
    %155 = vmatpush1.xpose.msra.mxu0 0.0
    %156 = vmatprep.subr.mxu0 0.0
    %157 = vmatpush1.xpose.msra.mxu0 0.0
    %158 = vmatprep.subr.mxu0 0.0
    %159 = vmatpush1.xpose.msra.mxu0 0.0
    %160 = vmatprep.subr.mxu0 0.0
    %161 = vmatpush1.xpose.msra.mxu0 0.0
    %162 = vmatprep.mubr.f32.mxu0 %v15
    %163 = vmatmul.mubr.f32.gmra.mrb[0].mxu0 %v14
    %v164 = vpop.f32.mrb[0].mxu0
    %v165 = vadd.f32 %v95, %v164
    %v166 = vpop.f32.mrb[0].mxu0
    %167 = vdwg.mxu0
    %168 = vmatprep.subr.mxu0 %v17
    %169 = vmatpush1.xpose.msra.mxu0 %v16
    %170 = vmatprep.subr.mxu0 0.0
    %171 = vmatpush1.xpose.msra.mxu0 0.0
    %172 = vmatprep.subr.mxu0 0.0
    %173 = vmatpush1.xpose.msra.mxu0 0.0
    %174 = vmatprep.subr.mxu0 0.0
    %175 = vmatpush1.xpose.msra.mxu0 0.0
    %176 = vmatprep.subr.mxu0 0.0
    %177 = vmatpush1.xpose.msra.mxu0 0.0
    %178 = vmatprep.subr.mxu0 0.0
    %179 = vmatpush1.xpose.msra.mxu0 0.0
    %180 = vmatprep.subr.mxu0 0.0
    %181 = vmatpush1.xpose.msra.mxu0 0.0
    %182 = vmatprep.subr.mxu0 0.0
    %183 = vmatpush1.xpose.msra.mxu0 0.0
    %184 = vmatprep.subr.mxu0 0.0
    %185 = vmatpush1.xpose.msra.mxu0 0.0
    %186 = vmatprep.subr.mxu0 0.0
    %187 = vmatpush1.xpose.msra.mxu0 0.0
    %188 = vmatprep.subr.mxu0 0.0
    %189 = vmatpush1.xpose.msra.mxu0 0.0
    %190 = vmatprep.subr.mxu0 0.0
    %191 = vmatpush1.xpose.msra.mxu0 0.0
    %192 = vmatprep.subr.mxu0 0.0
    %193 = vmatpush1.xpose.msra.mxu0 0.0
    %194 = vmatprep.subr.mxu0 0.0
    %195 = vmatpush1.xpose.msra.mxu0 0.0
    %196 = vmatprep.subr.mxu0 0.0
    %197 = vmatpush1.xpose.msra.mxu0 0.0
    %198 = vmatprep.subr.mxu0 0.0
    %199 = vmatpush1.xpose.msra.mxu0 0.0
    %200 = vmatprep.subr.mxu0 0.0
    %201 = vmatpush1.xpose.msra.mxu0 0.0
    %202 = vmatprep.subr.mxu0 0.0
    %203 = vmatpush1.xpose.msra.mxu0 0.0
    %204 = vmatprep.subr.mxu0 0.0
    %205 = vmatpush1.xpose.msra.mxu0 0.0
    %206 = vmatprep.subr.mxu0 0.0
    %207 = vmatpush1.xpose.msra.mxu0 0.0
    %208 = vmatprep.subr.mxu0 0.0
    %209 = vmatpush1.xpose.msra.mxu0 0.0
    %210 = vmatprep.subr.mxu0 0.0
    %211 = vmatpush1.xpose.msra.mxu0 0.0
    %212 = vmatprep.subr.mxu0 0.0
    %213 = vmatpush1.xpose.msra.mxu0 0.0
    %214 = vmatprep.subr.mxu0 0.0
    %215 = vmatpush1.xpose.msra.mxu0 0.0
    %216 = vmatprep.subr.mxu0 0.0
    %217 = vmatpush1.xpose.msra.mxu0 0.0
    %218 = vmatprep.subr.mxu0 0.0
    %219 = vmatpush1.xpose.msra.mxu0 0.0
    %220 = vmatprep.subr.mxu0 0.0
    %221 = vmatpush1.xpose.msra.mxu0 0.0
    %222 = vmatprep.subr.mxu0 0.0
    %223 = vmatpush1.xpose.msra.mxu0 0.0
    %224 = vmatprep.subr.mxu0 0.0
    %225 = vmatpush1.xpose.msra.mxu0 0.0
    %226 = vmatprep.subr.mxu0 0.0
    %227 = vmatpush1.xpose.msra.mxu0 0.0
    %228 = vmatprep.subr.mxu0 0.0
    %229 = vmatpush1.xpose.msra.mxu0 0.0
    %230 = vmatprep.subr.mxu0 0.0
    %231 = vmatpush1.xpose.msra.mxu0 0.0
    %232 = vmatprep.mubr.f32.mxu0 %v17
    %233 = vmatmul.mubr.f32.gmra.mrb[0].mxu0 %v16
    %v234 = vpop.f32.mrb[0].mxu0
    %v235 = vadd.f32 %v165, %v234
    %v236 = vpop.f32.mrb[0].mxu0
    %237 = vdwg.mxu0
    %238 = vmatprep.subr.mxu0 %v19
    %239 = vmatpush1.xpose.msra.mxu0 %v18
    %240 = vmatprep.subr.mxu0 0.0
    %241 = vmatpush1.xpose.msra.mxu0 0.0
    %242 = vmatprep.subr.mxu0 0.0
    %243 = vmatpush1.xpose.msra.mxu0 0.0
    %244 = vmatprep.subr.mxu0 0.0
    %245 = vmatpush1.xpose.msra.mxu0 0.0
    %246 = vmatprep.subr.mxu0 0.0
    %247 = vmatpush1.xpose.msra.mxu0 0.0
    %248 = vmatprep.subr.mxu0 0.0
    %249 = vmatpush1.xpose.msra.mxu0 0.0
    %250 = vmatprep.subr.mxu0 0.0
    %251 = vmatpush1.xpose.msra.mxu0 0.0
    %252 = vmatprep.subr.mxu0 0.0
    %253 = vmatpush1.xpose.msra.mxu0 0.0
    %254 = vmatprep.subr.mxu0 0.0
    %255 = vmatpush1.xpose.msra.mxu0 0.0
    %256 = vmatprep.subr.mxu0 0.0
    %257 = vmatpush1.xpose.msra.mxu0 0.0
    %258 = vmatprep.subr.mxu0 0.0
    %259 = vmatpush1.xpose.msra.mxu0 0.0
    %260 = vmatprep.subr.mxu0 0.0
    %261 = vmatpush1.xpose.msra.mxu0 0.0
    %262 = vmatprep.subr.mxu0 0.0
    %263 = vmatpush1.xpose.msra.mxu0 0.0
    %264 = vmatprep.subr.mxu0 0.0
    %265 = vmatpush1.xpose.msra.mxu0 0.0
    %266 = vmatprep.subr.mxu0 0.0
    %267 = vmatpush1.xpose.msra.mxu0 0.0
    %268 = vmatprep.subr.mxu0 0.0
    %269 = vmatpush1.xpose.msra.mxu0 0.0
    %270 = vmatprep.subr.mxu0 0.0
    %271 = vmatpush1.xpose.msra.mxu0 0.0
    %272 = vmatprep.subr.mxu0 0.0
    %273 = vmatpush1.xpose.msra.mxu0 0.0
    %274 = vmatprep.subr.mxu0 0.0
    %275 = vmatpush1.xpose.msra.mxu0 0.0
    %276 = vmatprep.subr.mxu0 0.0
    %277 = vmatpush1.xpose.msra.mxu0 0.0
    %278 = vmatprep.subr.mxu0 0.0
    %279 = vmatpush1.xpose.msra.mxu0 0.0
    %280 = vmatprep.subr.mxu0 0.0
    %281 = vmatpush1.xpose.msra.mxu0 0.0
    %282 = vmatprep.subr.mxu0 0.0
    %283 = vmatpush1.xpose.msra.mxu0 0.0
    %284 = vmatprep.subr.mxu0 0.0
    %285 = vmatpush1.xpose.msra.mxu0 0.0
    %286 = vmatprep.subr.mxu0 0.0
    %287 = vmatpush1.xpose.msra.mxu0 0.0
    %288 = vmatprep.subr.mxu0 0.0
    %289 = vmatpush1.xpose.msra.mxu0 0.0
    %290 = vmatprep.subr.mxu0 0.0
    %291 = vmatpush1.xpose.msra.mxu0 0.0
    %292 = vmatprep.subr.mxu0 0.0
    %293 = vmatpush1.xpose.msra.mxu0 0.0
    %294 = vmatprep.subr.mxu0 0.0
    %295 = vmatpush1.xpose.msra.mxu0 0.0
    %296 = vmatprep.subr.mxu0 0.0
    %297 = vmatpush1.xpose.msra.mxu0 0.0
    %298 = vmatprep.subr.mxu0 0.0
    %299 = vmatpush1.xpose.msra.mxu0 0.0
    %300 = vmatprep.subr.mxu0 0.0
    %301 = vmatpush1.xpose.msra.mxu0 0.0
    %302 = vmatprep.mubr.f32.mxu0 %v19
    %303 = vmatmul.mubr.f32.gmra.mrb[0].mxu0 %v18
    %v304 = vpop.f32.mrb[0].mxu0
    %v305 = vadd.f32 %v235, %v304
    %v306 = vpop.f32.mrb[0].mxu0
    %307 = vdwg.mxu0
    %308 = vmatprep.subr.mxu0 %v21
    %309 = vmatpush1.xpose.msra.mxu0 %v20
    %310 = vmatprep.subr.mxu0 0.0
    %311 = vmatpush1.xpose.msra.mxu0 0.0
    %312 = vmatprep.subr.mxu0 0.0
    %313 = vmatpush1.xpose.msra.mxu0 0.0
    %314 = vmatprep.subr.mxu0 0.0
    %315 = vmatpush1.xpose.msra.mxu0 0.0
    %316 = vmatprep.subr.mxu0 0.0
    %317 = vmatpush1.xpose.msra.mxu0 0.0
    %318 = vmatprep.subr.mxu0 0.0
    %319 = vmatpush1.xpose.msra.mxu0 0.0
    %320 = vmatprep.subr.mxu0 0.0
    %321 = vmatpush1.xpose.msra.mxu0 0.0
    %322 = vmatprep.subr.mxu0 0.0
    %323 = vmatpush1.xpose.msra.mxu0 0.0
    %324 = vmatprep.subr.mxu0 0.0
    %325 = vmatpush1.xpose.msra.mxu0 0.0
    %326 = vmatprep.subr.mxu0 0.0
    %327 = vmatpush1.xpose.msra.mxu0 0.0
    %328 = vmatprep.subr.mxu0 0.0
    %329 = vmatpush1.xpose.msra.mxu0 0.0
    %330 = vmatprep.subr.mxu0 0.0
    %331 = vmatpush1.xpose.msra.mxu0 0.0
    %332 = vmatprep.subr.mxu0 0.0
    %333 = vmatpush1.xpose.msra.mxu0 0.0
    %334 = vmatprep.subr.mxu0 0.0
    %335 = vmatpush1.xpose.msra.mxu0 0.0
    %336 = vmatprep.subr.mxu0 0.0
    %337 = vmatpush1.xpose.msra.mxu0 0.0
    %338 = vmatprep.subr.mxu0 0.0
    %339 = vmatpush1.xpose.msra.mxu0 0.0
    %340 = vmatprep.subr.mxu0 0.0
    %341 = vmatpush1.xpose.msra.mxu0 0.0
    %342 = vmatprep.subr.mxu0 0.0
    %343 = vmatpush1.xpose.msra.mxu0 0.0
    %344 = vmatprep.subr.mxu0 0.0
    %345 = vmatpush1.xpose.msra.mxu0 0.0
    %346 = vmatprep.subr.mxu0 0.0
    %347 = vmatpush1.xpose.msra.mxu0 0.0
    %348 = vmatprep.subr.mxu0 0.0
    %349 = vmatpush1.xpose.msra.mxu0 0.0
    %350 = vmatprep.subr.mxu0 0.0
    %351 = vmatpush1.xpose.msra.mxu0 0.0
    %352 = vmatprep.subr.mxu0 0.0
    %353 = vmatpush1.xpose.msra.mxu0 0.0
    %354 = vmatprep.subr.mxu0 0.0
    %355 = vmatpush1.xpose.msra.mxu0 0.0
    %356 = vmatprep.subr.mxu0 0.0
    %357 = vmatpush1.xpose.msra.mxu0 0.0
    %358 = vmatprep.subr.mxu0 0.0
    %359 = vmatpush1.xpose.msra.mxu0 0.0
    %360 = vmatprep.subr.mxu0 0.0
    %361 = vmatpush1.xpose.msra.mxu0 0.0
    %362 = vmatprep.subr.mxu0 0.0
    %363 = vmatpush1.xpose.msra.mxu0 0.0
    %364 = vmatprep.subr.mxu0 0.0
    %365 = vmatpush1.xpose.msra.mxu0 0.0
    %366 = vmatprep.subr.mxu0 0.0
    %367 = vmatpush1.xpose.msra.mxu0 0.0
    %368 = vmatprep.subr.mxu0 0.0
    %369 = vmatpush1.xpose.msra.mxu0 0.0
    %370 = vmatprep.subr.mxu0 0.0
    %371 = vmatpush1.xpose.msra.mxu0 0.0
    %372 = vmatprep.mubr.f32.mxu0 %v21
    %373 = vmatmul.mubr.f32.gmra.mrb[0].mxu0 %v20
    %v374 = vpop.f32.mrb[0].mxu0
    %v375 = vadd.f32 %v305, %v374
    %v376 = vpop.f32.mrb[0].mxu0
    %377 = vdwg.mxu0
    %378 = vmatprep.subr.mxu0 %v23
    %379 = vmatpush1.xpose.msra.mxu0 %v22
    %380 = vmatprep.subr.mxu0 0.0
    %381 = vmatpush1.xpose.msra.mxu0 0.0
    %382 = vmatprep.subr.mxu0 0.0
    %383 = vmatpush1.xpose.msra.mxu0 0.0
    %384 = vmatprep.subr.mxu0 0.0
    %385 = vmatpush1.xpose.msra.mxu0 0.0
    %386 = vmatprep.subr.mxu0 0.0
    %387 = vmatpush1.xpose.msra.mxu0 0.0
    %388 = vmatprep.subr.mxu0 0.0
    %389 = vmatpush1.xpose.msra.mxu0 0.0
    %390 = vmatprep.subr.mxu0 0.0
    %391 = vmatpush1.xpose.msra.mxu0 0.0
    %392 = vmatprep.subr.mxu0 0.0
    %393 = vmatpush1.xpose.msra.mxu0 0.0
    %394 = vmatprep.subr.mxu0 0.0
    %395 = vmatpush1.xpose.msra.mxu0 0.0
    %396 = vmatprep.subr.mxu0 0.0
    %397 = vmatpush1.xpose.msra.mxu0 0.0
    %398 = vmatprep.subr.mxu0 0.0
    %399 = vmatpush1.xpose.msra.mxu0 0.0
    %400 = vmatprep.subr.mxu0 0.0
    %401 = vmatpush1.xpose.msra.mxu0 0.0
    %402 = vmatprep.subr.mxu0 0.0
    %403 = vmatpush1.xpose.msra.mxu0 0.0
    %404 = vmatprep.subr.mxu0 0.0
    %405 = vmatpush1.xpose.msra.mxu0 0.0
    %406 = vmatprep.subr.mxu0 0.0
    %407 = vmatpush1.xpose.msra.mxu0 0.0
    %408 = vmatprep.subr.mxu0 0.0
    %409 = vmatpush1.xpose.msra.mxu0 0.0
    %410 = vmatprep.subr.mxu0 0.0
    %411 = vmatpush1.xpose.msra.mxu0 0.0
    %412 = vmatprep.subr.mxu0 0.0
    %413 = vmatpush1.xpose.msra.mxu0 0.0
    %414 = vmatprep.subr.mxu0 0.0
    %415 = vmatpush1.xpose.msra.mxu0 0.0
    %416 = vmatprep.subr.mxu0 0.0
    %417 = vmatpush1.xpose.msra.mxu0 0.0
    %418 = vmatprep.subr.mxu0 0.0
    %419 = vmatpush1.xpose.msra.mxu0 0.0
    %420 = vmatprep.subr.mxu0 0.0
    %421 = vmatpush1.xpose.msra.mxu0 0.0
    %422 = vmatprep.subr.mxu0 0.0
    %423 = vmatpush1.xpose.msra.mxu0 0.0
    %424 = vmatprep.subr.mxu0 0.0
    %425 = vmatpush1.xpose.msra.mxu0 0.0
    %426 = vmatprep.subr.mxu0 0.0
    %427 = vmatpush1.xpose.msra.mxu0 0.0
    %428 = vmatprep.subr.mxu0 0.0
    %429 = vmatpush1.xpose.msra.mxu0 0.0
    %430 = vmatprep.subr.mxu0 0.0
    %431 = vmatpush1.xpose.msra.mxu0 0.0
    %432 = vmatprep.subr.mxu0 0.0
    %433 = vmatpush1.xpose.msra.mxu0 0.0
    %434 = vmatprep.subr.mxu0 0.0
    %435 = vmatpush1.xpose.msra.mxu0 0.0
    %436 = vmatprep.subr.mxu0 0.0
    %437 = vmatpush1.xpose.msra.mxu0 0.0
    %438 = vmatprep.subr.mxu0 0.0
    %439 = vmatpush1.xpose.msra.mxu0 0.0
    %440 = vmatprep.subr.mxu0 0.0
    %441 = vmatpush1.xpose.msra.mxu0 0.0
    %442 = vmatprep.mubr.f32.mxu0 %v23
    %443 = vmatmul.mubr.f32.gmra.mrb[0].mxu0 %v22
    %v444 = vpop.f32.mrb[0].mxu0
    %v445 = vadd.f32 %v375, %v444
    %v446 = vpop.f32.mrb[0].mxu0
    %447 = vdwg.mxu0
    %448 = vmatprep.subr.mxu0 %v25
    %449 = vmatpush1.xpose.msra.mxu0 %v24
    %450 = vmatprep.subr.mxu0 0.0
    %451 = vmatpush1.xpose.msra.mxu0 0.0
    %452 = vmatprep.subr.mxu0 0.0
    %453 = vmatpush1.xpose.msra.mxu0 0.0
    %454 = vmatprep.subr.mxu0 0.0
    %455 = vmatpush1.xpose.msra.mxu0 0.0
    %456 = vmatprep.subr.mxu0 0.0
    %457 = vmatpush1.xpose.msra.mxu0 0.0
    %458 = vmatprep.subr.mxu0 0.0
    %459 = vmatpush1.xpose.msra.mxu0 0.0
    %460 = vmatprep.subr.mxu0 0.0
    %461 = vmatpush1.xpose.msra.mxu0 0.0
    %462 = vmatprep.subr.mxu0 0.0
    %463 = vmatpush1.xpose.msra.mxu0 0.0
    %464 = vmatprep.subr.mxu0 0.0
    %465 = vmatpush1.xpose.msra.mxu0 0.0
    %466 = vmatprep.subr.mxu0 0.0
    %467 = vmatpush1.xpose.msra.mxu0 0.0
    %468 = vmatprep.subr.mxu0 0.0
    %469 = vmatpush1.xpose.msra.mxu0 0.0
    %470 = vmatprep.subr.mxu0 0.0
    %471 = vmatpush1.xpose.msra.mxu0 0.0
    %472 = vmatprep.subr.mxu0 0.0
    %473 = vmatpush1.xpose.msra.mxu0 0.0
    %474 = vmatprep.subr.mxu0 0.0
    %475 = vmatpush1.xpose.msra.mxu0 0.0
    %476 = vmatprep.subr.mxu0 0.0
    %477 = vmatpush1.xpose.msra.mxu0 0.0
    %478 = vmatprep.subr.mxu0 0.0
    %479 = vmatpush1.xpose.msra.mxu0 0.0
    %480 = vmatprep.subr.mxu0 0.0
    %481 = vmatpush1.xpose.msra.mxu0 0.0
    %482 = vmatprep.subr.mxu0 0.0
    %483 = vmatpush1.xpose.msra.mxu0 0.0
    %484 = vmatprep.subr.mxu0 0.0
    %485 = vmatpush1.xpose.msra.mxu0 0.0
    %486 = vmatprep.subr.mxu0 0.0
    %487 = vmatpush1.xpose.msra.mxu0 0.0
    %488 = vmatprep.subr.mxu0 0.0
    %489 = vmatpush1.xpose.msra.mxu0 0.0
    %490 = vmatprep.subr.mxu0 0.0
    %491 = vmatpush1.xpose.msra.mxu0 0.0
    %492 = vmatprep.subr.mxu0 0.0
    %493 = vmatpush1.xpose.msra.mxu0 0.0
    %494 = vmatprep.subr.mxu0 0.0
    %495 = vmatpush1.xpose.msra.mxu0 0.0
    %496 = vmatprep.subr.mxu0 0.0
    %497 = vmatpush1.xpose.msra.mxu0 0.0
    %498 = vmatprep.subr.mxu0 0.0
    %499 = vmatpush1.xpose.msra.mxu0 0.0
    %500 = vmatprep.subr.mxu0 0.0
    %501 = vmatpush1.xpose.msra.mxu0 0.0
    %502 = vmatprep.subr.mxu0 0.0
    %503 = vmatpush1.xpose.msra.mxu0 0.0
    %504 = vmatprep.subr.mxu0 0.0
    %505 = vmatpush1.xpose.msra.mxu0 0.0
    %506 = vmatprep.subr.mxu0 0.0
    %507 = vmatpush1.xpose.msra.mxu0 0.0
    %508 = vmatprep.subr.mxu0 0.0
    %509 = vmatpush1.xpose.msra.mxu0 0.0
    %510 = vmatprep.subr.mxu0 0.0
    %511 = vmatpush1.xpose.msra.mxu0 0.0
    %512 = vmatprep.mubr.f32.mxu0 %v25
    %513 = vmatmul.mubr.f32.gmra.mrb[0].mxu0 %v24
    %v514 = vpop.f32.mrb[0].mxu0
    %v515 = vadd.f32 %v445, %v514
    %v516 = vpop.f32.mrb[0].mxu0
    %517 = vdwg.mxu0
    %518 = vmatprep.subr.mxu0 %v27
    %519 = vmatpush1.xpose.msra.mxu0 %v26
    %520 = vmatprep.subr.mxu0 0.0
    %521 = vmatpush1.xpose.msra.mxu0 0.0
    %522 = vmatprep.subr.mxu0 0.0
    %523 = vmatpush1.xpose.msra.mxu0 0.0
    %524 = vmatprep.subr.mxu0 0.0
    %525 = vmatpush1.xpose.msra.mxu0 0.0
    %526 = vmatprep.subr.mxu0 0.0
    %527 = vmatpush1.xpose.msra.mxu0 0.0
    %528 = vmatprep.subr.mxu0 0.0
    %529 = vmatpush1.xpose.msra.mxu0 0.0
    %530 = vmatprep.subr.mxu0 0.0
    %531 = vmatpush1.xpose.msra.mxu0 0.0
    %532 = vmatprep.subr.mxu0 0.0
    %533 = vmatpush1.xpose.msra.mxu0 0.0
    %534 = vmatprep.subr.mxu0 0.0
    %535 = vmatpush1.xpose.msra.mxu0 0.0
    %536 = vmatprep.subr.mxu0 0.0
    %537 = vmatpush1.xpose.msra.mxu0 0.0
    %538 = vmatprep.subr.mxu0 0.0
    %539 = vmatpush1.xpose.msra.mxu0 0.0
    %540 = vmatprep.subr.mxu0 0.0
    %541 = vmatpush1.xpose.msra.mxu0 0.0
    %542 = vmatprep.subr.mxu0 0.0
    %543 = vmatpush1.xpose.msra.mxu0 0.0
    %544 = vmatprep.subr.mxu0 0.0
    %545 = vmatpush1.xpose.msra.mxu0 0.0
    %546 = vmatprep.subr.mxu0 0.0
    %547 = vmatpush1.xpose.msra.mxu0 0.0
    %548 = vmatprep.subr.mxu0 0.0
    %549 = vmatpush1.xpose.msra.mxu0 0.0
    %550 = vmatprep.subr.mxu0 0.0
    %551 = vmatpush1.xpose.msra.mxu0 0.0
    %552 = vmatprep.subr.mxu0 0.0
    %553 = vmatpush1.xpose.msra.mxu0 0.0
    %554 = vmatprep.subr.mxu0 0.0
    %555 = vmatpush1.xpose.msra.mxu0 0.0
    %556 = vmatprep.subr.mxu0 0.0
    %557 = vmatpush1.xpose.msra.mxu0 0.0
    %558 = vmatprep.subr.mxu0 0.0
    %559 = vmatpush1.xpose.msra.mxu0 0.0
    %560 = vmatprep.subr.mxu0 0.0
    %561 = vmatpush1.xpose.msra.mxu0 0.0
    %562 = vmatprep.subr.mxu0 0.0
    %563 = vmatpush1.xpose.msra.mxu0 0.0
    %564 = vmatprep.subr.mxu0 0.0
    %565 = vmatpush1.xpose.msra.mxu0 0.0
    %566 = vmatprep.subr.mxu0 0.0
    %567 = vmatpush1.xpose.msra.mxu0 0.0
    %568 = vmatprep.subr.mxu0 0.0
    %569 = vmatpush1.xpose.msra.mxu0 0.0
    %570 = vmatprep.subr.mxu0 0.0
    %571 = vmatpush1.xpose.msra.mxu0 0.0
    %572 = vmatprep.subr.mxu0 0.0
    %573 = vmatpush1.xpose.msra.mxu0 0.0
    %574 = vmatprep.subr.mxu0 0.0
    %575 = vmatpush1.xpose.msra.mxu0 0.0
    %576 = vmatprep.subr.mxu0 0.0
    %577 = vmatpush1.xpose.msra.mxu0 0.0
    %578 = vmatprep.subr.mxu0 0.0
    %579 = vmatpush1.xpose.msra.mxu0 0.0
    %580 = vmatprep.subr.mxu0 0.0
    %581 = vmatpush1.xpose.msra.mxu0 0.0
    %582 = vmatprep.mubr.f32.mxu0 %v27
    %583 = vmatmul.mubr.f32.gmra.mrb[0].mxu0 %v26
    %v584 = vpop.f32.mrb[0].mxu0
    %v585 = vadd.f32 %v515, %v584
    %v586 = vpop.f32.mrb[0].mxu0
    %587 = vdwg.mxu0
    %v588 = vmul.f32 %v12, %v12
    %v589 = vmul.f32 %v13, %v13
    %v590 = vmul.f32 %v14, %v14
    %v591 = vmul.f32 %v15, %v15
    %v592 = vmul.f32 %v16, %v16
    %v593 = vmul.f32 %v17, %v17
    %v594 = vmul.f32 %v18, %v18
    %v595 = vmul.f32 %v19, %v19
    %v596 = vmul.f32 %v20, %v20
    %v597 = vmul.f32 %v21, %v21
    %v598 = vmul.f32 %v22, %v22
    %v599 = vmul.f32 %v23, %v23
    %v600 = vmul.f32 %v24, %v24
    %v601 = vmul.f32 %v25, %v25
    %v602 = vmul.f32 %v26, %v26
    %v603 = vmul.f32 %v27, %v27
    %v604 = vadd.f32 %v588, %v589
    %v605 = vadd.f32 %v604, %v590
    %v606 = vadd.f32 %v605, %v591
    %v607 = vadd.f32 %v606, %v592
    %v608 = vadd.f32 %v607, %v593
    %v609 = vadd.f32 %v608, %v594
    %v610 = vadd.f32 %v609, %v595
    %v611 = vadd.f32 %v610, %v596
    %v612 = vadd.f32 %v611, %v597
    %v613 = vadd.f32 %v612, %v598
    %v614 = vadd.f32 %v613, %v599
    %v615 = vadd.f32 %v614, %v600
    %v616 = vadd.f32 %v615, %v601
    %v617 = vadd.f32 %v616, %v602
    %v618 = vadd.f32 %v617, %v603
    %619 = vadd.xlane.f32.xlu0 %v618
    %v620 = vpop.xlane.xlu0 %619
    %621 = vxpose.xlu0.b32.start [1/16] %v620, 128
    %622 = vxpose.xlu0.b32.cont [2/16] 0.0, 128
    %623 = vxpose.xlu0.b32.cont [3/16] 0.0, 128
    %624 = vxpose.xlu0.b32.cont [4/16] 0.0, 128
    %625 = vxpose.xlu0.b32.cont [5/16] 0.0, 128
    %626 = vxpose.xlu0.b32.cont [6/16] 0.0, 128
    %627 = vxpose.xlu0.b32.cont [7/16] 0.0, 128
    %628 = vxpose.xlu0.b32.cont [8/16] 0.0, 128
    %629 = vxpose.xlu0.b32.cont [9/16] 0.0, 128
    %630 = vxpose.xlu0.b32.cont [10/16] 0.0, 128
    %631 = vxpose.xlu0.b32.cont [11/16] 0.0, 128
    %632 = vxpose.xlu0.b32.cont [12/16] 0.0, 128
    %633 = vxpose.xlu0.b32.cont [13/16] 0.0, 128
    %634 = vxpose.xlu0.b32.cont [14/16] 0.0, 128
    %635 = vxpose.xlu0.b32.cont [15/16] 0.0, 128
    %636 = vxpose.xlu0.b32.end [16/16] 0.0, 128
    %v637 = vpop.trf.xlu0
    %v638 = vpop.trf.xlu0
    %v639 = vpop.trf.xlu0
    %v640 = vpop.trf.xlu0
    %v641 = vpop.trf.xlu0
    %v642 = vpop.trf.xlu0
    %v643 = vpop.trf.xlu0
    %v644 = vpop.trf.xlu0
    %v645 = vpop.trf.xlu0
    %v646 = vpop.trf.xlu0
    %v647 = vpop.trf.xlu0
    %v648 = vpop.trf.xlu0
    %v649 = vpop.trf.xlu0
    %v650 = vpop.trf.xlu0
    %v651 = vpop.trf.xlu0
    %v652 = vpop.trf.xlu0
    %v653 = vlaneseq
    %v654 = vshrl.u32 %v653, 7
    %v655 = vsub.s32 0, %v654
    %v656 = vrot.slane %v637, %v655
    %v657 = vadd.f32 %v620, %v656
    %v658 = vmul.f32 %v585, 2.0
    %v659 = vsub.f32 %v657, %v658
    %v660 = vmax.f32 %v659, 0.0
    %v661 = vadd.f32 %v660, 1e-12
    %v662 = vrsqrt.pop %v661
    %v663 = vmul.f32 %v661, %v662
    %vm664 = vcmp.eq.f32.partialorder %v661, inf
    %v665 = vsel %vm664, %v661, %v663
    %vm666 = vcmp.eq.f32.partialorder %v661, 0.0
    %v667 = vand.u32 %v661, 2147483648
    %v668 = vsel %vm666, %v667, %v665
    %vm669 = vcmask 64512
    %v670 = vsel %vm669, %v668, 0.0
    %v671 = vrot.slane %v670, 4
    %v672 = vadd.f32 %v670, %v671
    %v673 = vrot.slane %v672, 2
    %v674 = vadd.f32 %v672, %v673
    %v675 = vrot.slane %v674, 1
    %v676 = vadd.f32 %v674, %v675
    %v677 = vrcp.pop 6.0
    %v678 = vmul.f32 %v676, %v677
    %679 = vadd.xlane.f32.xlu0 %v670
    %v680 = vpop.xlane.xlu0 %679
    %v681 = vmul.f32 %v680, %v677
    %v682 = vrot.slane %v680, 4
    %v683 = vadd.f32 %v680, %v682
    %v684 = vrot.slane %v683, 2
    %v685 = vadd.f32 %v683, %v684
    %v686 = vrot.slane %v685, 1
    %v687 = vadd.f32 %v685, %v686
    %s688 = vtos %v687
    %v689 = vrcp.pop 42.0
    %s690 = vtos %v689
    %s691 = smul.f32 %s688, %s690
    %v692 = vsub.f32 %v668, %v678
    %v693 = vsub.f32 %v692, %v681
    %v694 = vstv %s691
    %v695 = vadd.f32 %v693, %v694
    %v696 = vlaneseq
    %v697 = vshrl.u32 %v696, 7
    %v698 = vlaneseq
    %v699 = vand.u32 %v698, 127
    %vm700 = vcmp.eq.s32.totalorder %v697, %v699
    %v701 = vsel %vm700, 0.0, %v695
    %v702 = vld [vmem:[%s1] sm:$0xff]
    %v703 = vld [vmem:[%s1 + $0x8] sm:$0xff]
    %v704 = vld [vmem:[%s1 + $0x10] sm:$0xff]
    %v705 = vld [vmem:[%s1 + $0x18] sm:$0xff]
    %706 = vmatprep.subr.mxu0 %v703
    %707 = vmatpush1.xpose.msra.mxu0 %v702
    %708 = vmatprep.subr.mxu0 0.0
    %709 = vmatpush1.xpose.msra.mxu0 0.0
    %710 = vmatprep.subr.mxu0 0.0
    %711 = vmatpush1.xpose.msra.mxu0 0.0
    %712 = vmatprep.subr.mxu0 0.0
    %713 = vmatpush1.xpose.msra.mxu0 0.0
    %714 = vmatprep.subr.mxu0 0.0
    %715 = vmatpush1.xpose.msra.mxu0 0.0
    %716 = vmatprep.subr.mxu0 0.0
    %717 = vmatpush1.xpose.msra.mxu0 0.0
    %718 = vmatprep.subr.mxu0 0.0
    %719 = vmatpush1.xpose.msra.mxu0 0.0
    %720 = vmatprep.subr.mxu0 0.0
    %721 = vmatpush1.xpose.msra.mxu0 0.0
    %722 = vmatprep.subr.mxu0 0.0
    %723 = vmatpush1.xpose.msra.mxu0 0.0
    %724 = vmatprep.subr.mxu0 0.0
    %725 = vmatpush1.xpose.msra.mxu0 0.0
    %726 = vmatprep.subr.mxu0 0.0
    %727 = vmatpush1.xpose.msra.mxu0 0.0
    %728 = vmatprep.subr.mxu0 0.0
    %729 = vmatpush1.xpose.msra.mxu0 0.0
    %730 = vmatprep.subr.mxu0 0.0
    %731 = vmatpush1.xpose.msra.mxu0 0.0
    %732 = vmatprep.subr.mxu0 0.0
    %733 = vmatpush1.xpose.msra.mxu0 0.0
    %734 = vmatprep.subr.mxu0 0.0
    %735 = vmatpush1.xpose.msra.mxu0 0.0
    %736 = vmatprep.subr.mxu0 0.0
    %737 = vmatpush1.xpose.msra.mxu0 0.0
    %738 = vmatprep.subr.mxu0 0.0
    %739 = vmatpush1.xpose.msra.mxu0 0.0
    %740 = vmatprep.subr.mxu0 0.0
    %741 = vmatpush1.xpose.msra.mxu0 0.0
    %742 = vmatprep.subr.mxu0 0.0
    %743 = vmatpush1.xpose.msra.mxu0 0.0
    %744 = vmatprep.subr.mxu0 0.0
    %745 = vmatpush1.xpose.msra.mxu0 0.0
    %746 = vmatprep.subr.mxu0 0.0
    %747 = vmatpush1.xpose.msra.mxu0 0.0
    %748 = vmatprep.subr.mxu0 0.0
    %749 = vmatpush1.xpose.msra.mxu0 0.0
    %750 = vmatprep.subr.mxu0 0.0
    %751 = vmatpush1.xpose.msra.mxu0 0.0
    %752 = vmatprep.subr.mxu0 0.0
    %753 = vmatpush1.xpose.msra.mxu0 0.0
    %754 = vmatprep.subr.mxu0 0.0
    %755 = vmatpush1.xpose.msra.mxu0 0.0
    %756 = vmatprep.subr.mxu0 0.0
    %757 = vmatpush1.xpose.msra.mxu0 0.0
    %758 = vmatprep.subr.mxu0 0.0
    %759 = vmatpush1.xpose.msra.mxu0 0.0
    %760 = vmatprep.subr.mxu0 0.0
    %761 = vmatpush1.xpose.msra.mxu0 0.0
    %762 = vmatprep.subr.mxu0 0.0
    %763 = vmatpush1.xpose.msra.mxu0 0.0
    %764 = vmatprep.subr.mxu0 0.0
    %765 = vmatpush1.xpose.msra.mxu0 0.0
    %766 = vmatprep.subr.mxu0 0.0
    %767 = vmatpush1.xpose.msra.mxu0 0.0
    %768 = vmatprep.subr.mxu0 0.0
    %769 = vmatpush1.xpose.msra.mxu0 0.0
    %770 = vmatprep.mubr.f32.mxu0 %v703
    %771 = vmatmul.mubr.f32.gmra.mrb[0].mxu0 %v702
    %v772 = vpop.f32.mrb[0].mxu0
    %v773 = vadd.f32 0.0, %v772
    %v774 = vpop.f32.mrb[0].mxu0
    %775 = vdwg.mxu0
    %776 = vmatprep.subr.mxu0 %v705
    %777 = vmatpush1.xpose.msra.mxu0 %v704
    %778 = vmatprep.subr.mxu0 0.0
    %779 = vmatpush1.xpose.msra.mxu0 0.0
    %780 = vmatprep.subr.mxu0 0.0
    %781 = vmatpush1.xpose.msra.mxu0 0.0
    %782 = vmatprep.subr.mxu0 0.0
    %783 = vmatpush1.xpose.msra.mxu0 0.0
    %784 = vmatprep.subr.mxu0 0.0
    %785 = vmatpush1.xpose.msra.mxu0 0.0
    %786 = vmatprep.subr.mxu0 0.0
    %787 = vmatpush1.xpose.msra.mxu0 0.0
    %788 = vmatprep.subr.mxu0 0.0
    %789 = vmatpush1.xpose.msra.mxu0 0.0
    %790 = vmatprep.subr.mxu0 0.0
    %791 = vmatpush1.xpose.msra.mxu0 0.0
    %792 = vmatprep.subr.mxu0 0.0
    %793 = vmatpush1.xpose.msra.mxu0 0.0
    %794 = vmatprep.subr.mxu0 0.0
    %795 = vmatpush1.xpose.msra.mxu0 0.0
    %796 = vmatprep.subr.mxu0 0.0
    %797 = vmatpush1.xpose.msra.mxu0 0.0
    %798 = vmatprep.subr.mxu0 0.0
    %799 = vmatpush1.xpose.msra.mxu0 0.0
    %800 = vmatprep.subr.mxu0 0.0
    %801 = vmatpush1.xpose.msra.mxu0 0.0
    %802 = vmatprep.subr.mxu0 0.0
    %803 = vmatpush1.xpose.msra.mxu0 0.0
    %804 = vmatprep.subr.mxu0 0.0
    %805 = vmatpush1.xpose.msra.mxu0 0.0
    %806 = vmatprep.subr.mxu0 0.0
    %807 = vmatpush1.xpose.msra.mxu0 0.0
    %808 = vmatprep.subr.mxu0 0.0
    %809 = vmatpush1.xpose.msra.mxu0 0.0
    %810 = vmatprep.subr.mxu0 0.0
    %811 = vmatpush1.xpose.msra.mxu0 0.0
    %812 = vmatprep.subr.mxu0 0.0
    %813 = vmatpush1.xpose.msra.mxu0 0.0
    %814 = vmatprep.subr.mxu0 0.0
    %815 = vmatpush1.xpose.msra.mxu0 0.0
    %816 = vmatprep.subr.mxu0 0.0
    %817 = vmatpush1.xpose.msra.mxu0 0.0
    %818 = vmatprep.subr.mxu0 0.0
    %819 = vmatpush1.xpose.msra.mxu0 0.0
    %820 = vmatprep.subr.mxu0 0.0
    %821 = vmatpush1.xpose.msra.mxu0 0.0
    %822 = vmatprep.subr.mxu0 0.0
    %823 = vmatpush1.xpose.msra.mxu0 0.0
    %824 = vmatprep.subr.mxu0 0.0
    %825 = vmatpush1.xpose.msra.mxu0 0.0
    %826 = vmatprep.subr.mxu0 0.0
    %827 = vmatpush1.xpose.msra.mxu0 0.0
    %828 = vmatprep.subr.mxu0 0.0
    %829 = vmatpush1.xpose.msra.mxu0 0.0
    %830 = vmatprep.subr.mxu0 0.0
    %831 = vmatpush1.xpose.msra.mxu0 0.0
    %832 = vmatprep.subr.mxu0 0.0
    %833 = vmatpush1.xpose.msra.mxu0 0.0
    %834 = vmatprep.subr.mxu0 0.0
    %835 = vmatpush1.xpose.msra.mxu0 0.0
    %836 = vmatprep.subr.mxu0 0.0
    %837 = vmatpush1.xpose.msra.mxu0 0.0
    %838 = vmatprep.subr.mxu0 0.0
    %839 = vmatpush1.xpose.msra.mxu0 0.0
    %840 = vmatprep.mubr.f32.mxu0 %v705
    %841 = vmatmul.mubr.f32.gmra.mrb[0].mxu0 %v704
    %v842 = vpop.f32.mrb[0].mxu0
    %v843 = vadd.f32 %v773, %v842
    %v844 = vpop.f32.mrb[0].mxu0
    %845 = vdwg.mxu0
    %v846 = vmul.f32 %v702, %v702
    %v847 = vmul.f32 %v703, %v703
    %v848 = vmul.f32 %v704, %v704
    %v849 = vmul.f32 %v705, %v705
    %v850 = vadd.f32 %v846, %v847
    %v851 = vadd.f32 %v850, %v848
    %v852 = vadd.f32 %v851, %v849
    %853 = vadd.xlane.f32.xlu0 %v852
    %v854 = vpop.xlane.xlu0 %853
    %855 = vxpose.xlu0.b32.start [1/16] %v854, 128
    %856 = vxpose.xlu0.b32.cont [2/16] 0.0, 128
    %857 = vxpose.xlu0.b32.cont [3/16] 0.0, 128
    %858 = vxpose.xlu0.b32.cont [4/16] 0.0, 128
    %859 = vxpose.xlu0.b32.cont [5/16] 0.0, 128
    %860 = vxpose.xlu0.b32.cont [6/16] 0.0, 128
    %861 = vxpose.xlu0.b32.cont [7/16] 0.0, 128
    %862 = vxpose.xlu0.b32.cont [8/16] 0.0, 128
    %863 = vxpose.xlu0.b32.cont [9/16] 0.0, 128
    %864 = vxpose.xlu0.b32.cont [10/16] 0.0, 128
    %865 = vxpose.xlu0.b32.cont [11/16] 0.0, 128
    %866 = vxpose.xlu0.b32.cont [12/16] 0.0, 128
    %867 = vxpose.xlu0.b32.cont [13/16] 0.0, 128
    %868 = vxpose.xlu0.b32.cont [14/16] 0.0, 128
    %869 = vxpose.xlu0.b32.cont [15/16] 0.0, 128
    %870 = vxpose.xlu0.b32.end [16/16] 0.0, 128
    %v871 = vpop.trf.xlu0
    %v872 = vpop.trf.xlu0
    %v873 = vpop.trf.xlu0
    %v874 = vpop.trf.xlu0
    %v875 = vpop.trf.xlu0
    %v876 = vpop.trf.xlu0
    %v877 = vpop.trf.xlu0
    %v878 = vpop.trf.xlu0
    %v879 = vpop.trf.xlu0
    %v880 = vpop.trf.xlu0
    %v881 = vpop.trf.xlu0
    %v882 = vpop.trf.xlu0
    %v883 = vpop.trf.xlu0
    %v884 = vpop.trf.xlu0
    %v885 = vpop.trf.xlu0
    %v886 = vpop.trf.xlu0
    %v887 = vlaneseq
    %v888 = vshrl.u32 %v887, 7
    %v889 = vsub.s32 0, %v888
    %v890 = vrot.slane %v871, %v889
    %v891 = vadd.f32 %v854, %v890
    %v892 = vmul.f32 %v843, 2.0
    %v893 = vsub.f32 %v891, %v892
    %v894 = vmax.f32 %v893, 0.0
    %v895 = vadd.f32 %v894, 1e-12
    %v896 = vrsqrt.pop %v895
    %v897 = vmul.f32 %v895, %v896
    %vm898 = vcmp.eq.f32.partialorder %v895, inf
    %v899 = vsel %vm898, %v895, %v897
    %vm900 = vcmp.eq.f32.partialorder %v895, 0.0
    %v901 = vand.u32 %v895, 2147483648
    %v902 = vsel %vm900, %v901, %v899
    %v903 = vsel %vm669, %v902, 0.0
    %v904 = vrot.slane %v903, 4
    %v905 = vadd.f32 %v903, %v904
    %v906 = vrot.slane %v905, 2
    %v907 = vadd.f32 %v905, %v906
    %v908 = vrot.slane %v907, 1
    %v909 = vadd.f32 %v907, %v908
    %v910 = vmul.f32 %v909, %v677
    %911 = vadd.xlane.f32.xlu0 %v903
    %v912 = vpop.xlane.xlu0 %911
    %v913 = vmul.f32 %v912, %v677
    %v914 = vrot.slane %v912, 4
    %v915 = vadd.f32 %v912, %v914
    %v916 = vrot.slane %v915, 2
    %v917 = vadd.f32 %v915, %v916
    %v918 = vrot.slane %v917, 1
    %v919 = vadd.f32 %v917, %v918
    %s920 = vtos %v919
    %v921 = vrcp.pop 42.0
    %s922 = vtos %v921
    %s923 = smul.f32 %s920, %s922
    %v924 = vsub.f32 %v902, %v910
    %v925 = vsub.f32 %v924, %v913
    %v926 = vstv %s923
    %v927 = vadd.f32 %v925, %v926
    %v928 = vsel %vm700, 0.0, %v927
    %v929 = vmul.f32 %v701, %v928
    %v930 = vsel %vm669, %v929, 0.0
    %931 = vadd.xlane.f32.xlu0 %v930
    %v932 = vpop.xlane.xlu0 %931
    %v933 = vrot.slane %v932, 4
    %v934 = vadd.f32 %v932, %v933
    %v935 = vrot.slane %v934, 2
    %v936 = vadd.f32 %v934, %v935
    %v937 = vrot.slane %v936, 1
    %v938 = vadd.f32 %v936, %v937
    %s939 = vtos %v938
    %v940 = vmul.f32 %v928, %v928
    %v941 = vsel %vm669, %v940, 0.0
    %942 = vadd.xlane.f32.xlu0 %v941
    %v943 = vpop.xlane.xlu0 %942
    %v944 = vrot.slane %v943, 4
    %v945 = vadd.f32 %v943, %v944
    %v946 = vrot.slane %v945, 2
    %v947 = vadd.f32 %v945, %v946
    %v948 = vrot.slane %v947, 1
    %v949 = vadd.f32 %v947, %v948
    %s950 = vtos %v949
    %v951 = vstv %s950
    %v952 = vrcp.pop %v951
    %s953 = vtos %v952
    %s954 = smul.f32 %s939, %s953
    %v955 = vstv %s954
    %v956 = vmul.f32 %v955, %v928
    %v957 = vsub.f32 %v701, %v956
    %958 = vst.msk [vmem:[#allocation2] sm:$0xff] %vm669, %v957
    // Predicated region
    $region10: #{_lambda_.5} parent=1 // pred_check
      _
    $region11: #{_lambda_.5} parent=1 // pred_check_branch
      %960 = sbr.rel (0) target = $region13
    $region12: #{_lambda_.5} parent=1 // pred_region
      %s962 = ssub.s32 128, 128
      %963 = vsyncadd [#allocation3], %s962
      %s965 = sshll.u32 [#allocation2], 4
      %s966 = int_to_ptr.vmem [resolvable:$true] %s965
      %968 = dma.vmem_to_hbm [thread:$0]  %s966, 128, %s2, [#allocation3]
    $region13: #{_lambda_.5} parent=1 // pred_fallthru
      _
    // Predicated region
    $region14: #{_lambda_.5} parent=1 // pred_check
      _
    $region15: #{_lambda_.5} parent=1 // pred_check_branch
      %970 = sbr.rel (0) target = $region17
    $region16: #{_lambda_.5} parent=1 // pred_region
      %971 = dma.done [#allocation3], 128
    $region17: #{_lambda_.5} parent=1 // pred_fallthru
      _
    %972 = vsyncpa [#allocation3], 1

// kernel: _lambda_.4
$region0: #{_lambda_.4}
  #allocation0 [shape = 'u32[]', space=smem, size = 0x4, offset = 0x4, fixed_abs, tag = 'smem constant byte address 0x4 - core index']
  #allocation1 [shape = 'u32[144,128]{1,0:T(1,128)}', space=vmem, size = 0x12000, scoped, tag = 'internal scratch']
  #allocation2 [shape = 'f32[32,128]{1,0:T(8,128)}', space=vmem, size = 0x4000, scoped, tag = 'scratch operand']
  %s0 = inlined_call_operand.vmem [shape: bf16[32,256], index: 0, kind: input, shape index: {}]
  %s1 = inlined_call_operand.vmem [shape: bf16[256,128], index: 1, kind: input, shape index: {}]
  %s2 = inlined_call_operand.vmem [shape: f32[1,128], index: 2, kind: input, shape index: {}]
  %s3 = inlined_call_operand.vmem [shape: f32[32,128], index: 3, kind: output, shape index: {}]
  %s4 = sld [smem:[#allocation0]]
  $region30: #{_lambda_.4} parent=0
    _
  %s6 = ssub.s32 1, %s4
  %s7 = scalar_select 0, %s6, %s4
  // Predicated region
  $region2: #{_lambda_.4} parent=0 // pred_check
    _
  $region3: #{_lambda_.4} parent=0 // pred_check_branch
    %9 = sbr.rel (0) target = $region5
  $region4: #{_lambda_.4} parent=0 // pred_region
    _
  $region5: #{_lambda_.4} parent=0 // pred_fallthru
    _
  // Predicated region
  $region6: #{_lambda_.4} parent=0 // pred_check
    _
  $region7: #{_lambda_.4} parent=0 // pred_check_branch
    %11 = sbr.rel (0) target = $region9
  $region8: #{_lambda_.4} parent=0 // pred_region
    _
  $region9: #{_lambda_.4} parent=0 // pred_fallthru
    _
  // Predicated region
  $region10: #{_lambda_.4} parent=0 // pred_check
    _
  $region11: #{_lambda_.4} parent=0 // pred_check_branch
    %13 = sbr.rel (0) target = $region13
  $region12: #{_lambda_.4} parent=0 // pred_region
    _
  $region13: #{_lambda_.4} parent=0 // pred_fallthru
    _
  %p15 = scmp.eq.s32.totalorder 0, 0
  // Predicated region
  $region14: #{_lambda_.4} parent=0 // pred_check
    %p16 = pneg %p15
  $region15: #{_lambda_.4} parent=0 // pred_check_branch
    %18 = sbr.rel (%p16) target = $region17
  $region16: #{_lambda_.4} parent=0 // pred_region
    %19 = vst [vmem:[#allocation2] sm:$0xff] 0.0
    %20 = vst [vmem:[#allocation2 + $0x8] sm:$0xff] 0.0
    %21 = vst [vmem:[#allocation2 + $0x10] sm:$0xff] 0.0
    %22 = vst [vmem:[#allocation2 + $0x18] sm:$0xff] 0.0
  $region17: #{_lambda_.4} parent=0 // pred_fallthru
    _
  %v23 = vld [vmem:[#allocation2] sm:$0xff]
  %v24 = vld [vmem:[#allocation2 + $0x8] sm:$0xff]
  %v25 = vld [vmem:[#allocation2 + $0x10] sm:$0xff]
  %v26 = vld [vmem:[#allocation2 + $0x18] sm:$0xff]
  %v27 = vld [vmem:[%s0] sm:$0xff]
  %v28 = vld [vmem:[%s0 + $0x8] sm:$0xff]
  %v29 = vld [vmem:[%s0 + $0x10] sm:$0xff]
  %v30 = vld [vmem:[%s0 + $0x18] sm:$0xff]
  %v31 = vld [vmem:[%s1] sm:$0xf]
  %v32 = vld [vmem:[%s1 + $0x4] sm:$0xf]
  %v33 = vld [vmem:[%s1 + $0x8] sm:$0xf]
  %v34 = vld [vmem:[%s1 + $0xc] sm:$0xf]
  %v35 = vld [vmem:[%s1 + $0x10] sm:$0xf]
  %v36 = vld [vmem:[%s1 + $0x14] sm:$0xf]
  %v37 = vld [vmem:[%s1 + $0x18] sm:$0xf]
  %v38 = vld [vmem:[%s1 + $0x1c] sm:$0xf]
  %v39 = vld [vmem:[%s1 + $0x20] sm:$0xf]
  %v40 = vld [vmem:[%s1 + $0x24] sm:$0xf]
  %v41 = vld [vmem:[%s1 + $0x28] sm:$0xf]
  %v42 = vld [vmem:[%s1 + $0x2c] sm:$0xf]
  %v43 = vld [vmem:[%s1 + $0x30] sm:$0xf]
  %v44 = vld [vmem:[%s1 + $0x34] sm:$0xf]
  %v45 = vld [vmem:[%s1 + $0x38] sm:$0xf]
  %v46 = vld [vmem:[%s1 + $0x3c] sm:$0xf]
  %v47 = vld [vmem:[%s1 + $0x40] sm:$0xf]
  %v48 = vld [vmem:[%s1 + $0x44] sm:$0xf]
  %v49 = vld [vmem:[%s1 + $0x48] sm:$0xf]
  %v50 = vld [vmem:[%s1 + $0x4c] sm:$0xf]
  %v51 = vld [vmem:[%s1 + $0x50] sm:$0xf]
  %v52 = vld [vmem:[%s1 + $0x54] sm:$0xf]
  %v53 = vld [vmem:[%s1 + $0x58] sm:$0xf]
  %v54 = vld [vmem:[%s1 + $0x5c] sm:$0xf]
  %v55 = vld [vmem:[%s1 + $0x60] sm:$0xf]
  %v56 = vld [vmem:[%s1 + $0x64] sm:$0xf]
  %v57 = vld [vmem:[%s1 + $0x68] sm:$0xf]
  %v58 = vld [vmem:[%s1 + $0x6c] sm:$0xf]
  %v59 = vld [vmem:[%s1 + $0x70] sm:$0xf]
  %v60 = vld [vmem:[%s1 + $0x74] sm:$0xf]
  %v61 = vld [vmem:[%s1 + $0x78] sm:$0xf]
  %v62 = vld [vmem:[%s1 + $0x7c] sm:$0xf]
  %v67 = vunpack.c.l.b16 %v27
  %v68 = vunpack.c.h.b16 %v27
  %v69 = vunpack.c.l.b16 %v28
  %v70 = vunpack.c.h.b16 %v28
  %v71 = vunpack.c.l.b16 %v29
  %v72 = vunpack.c.h.b16 %v29
  %v73 = vunpack.c.l.b16 %v30
  %v74 = vunpack.c.h.b16 %v30
  %v75 = vpack.c.b16 %v69, %v67
  %v76 = vpack.c.b16 %v70, %v68
  %v77 = vpack.c.b16 %v73, %v71
  %v78 = vpack.c.b16 %v74, %v72
  %v115 = vunpack.c.l.b16 %v31
  %v116 = vunpack.c.l.b16 %v32
  %v117 = vunpack.c.l.b16 %v33
  %v118 = vunpack.c.l.b16 %v34
  %v119 = vunpack.c.l.b16 %v35
  %v120 = vunpack.c.l.b16 %v36
  %v121 = vunpack.c.l.b16 %v37
  %v122 = vunpack.c.l.b16 %v38
  %v123 = vunpack.c.l.b16 %v39
  %v124 = vunpack.c.l.b16 %v40
  %v125 = vunpack.c.l.b16 %v41
  %v126 = vunpack.c.l.b16 %v42
  %v127 = vunpack.c.l.b16 %v43
  %v128 = vunpack.c.l.b16 %v44
  %v129 = vunpack.c.l.b16 %v45
  %v130 = vunpack.c.l.b16 %v46
  %v131 = vunpack.c.l.b16 %v47
  %v132 = vunpack.c.l.b16 %v48
  %v133 = vunpack.c.l.b16 %v49
  %v134 = vunpack.c.l.b16 %v50
  %v135 = vunpack.c.l.b16 %v51
  %v136 = vunpack.c.l.b16 %v52
  %v137 = vunpack.c.l.b16 %v53
  %v138 = vunpack.c.l.b16 %v54
  %v139 = vunpack.c.l.b16 %v55
  %v140 = vunpack.c.l.b16 %v56
  %v141 = vunpack.c.l.b16 %v57
  %v142 = vunpack.c.l.b16 %v58
  %v143 = vunpack.c.l.b16 %v59
  %v144 = vunpack.c.l.b16 %v60
  %v145 = vunpack.c.l.b16 %v61
  %v146 = vunpack.c.l.b16 %v62
  %v147 = vpack.c.b16 %v116, %v115
  %v148 = vpack.c.b16 %v118, %v117
  %v149 = vpack.c.b16 %v120, %v119
  %v150 = vpack.c.b16 %v122, %v121
  %v151 = vpack.c.b16 %v124, %v123
  %v152 = vpack.c.b16 %v126, %v125
  %v153 = vpack.c.b16 %v128, %v127
  %v154 = vpack.c.b16 %v130, %v129
  %v155 = vpack.c.b16 %v132, %v131
  %v156 = vpack.c.b16 %v134, %v133
  %v157 = vpack.c.b16 %v136, %v135
  %v158 = vpack.c.b16 %v138, %v137
  %v159 = vpack.c.b16 %v140, %v139
  %v160 = vpack.c.b16 %v142, %v141
  %v161 = vpack.c.b16 %v144, %v143
  %v162 = vpack.c.b16 %v146, %v145
  %179 = vmatprep.subr.bf16.mxu0 0
  %180 = vmatpush1.bf16.msra.mxu0 %v147
  %181 = vmatprep.subr.bf16.mxu0 0
  %182 = vmatpush1.bf16.msra.mxu0 %v148
  %183 = vmatprep.subr.bf16.mxu0 0
  %184 = vmatpush1.bf16.msra.mxu0 %v149
  %185 = vmatprep.subr.bf16.mxu0 0
  %186 = vmatpush1.bf16.msra.mxu0 %v150
  %187 = vmatprep.subr.bf16.mxu0 0
  %188 = vmatpush1.bf16.msra.mxu0 %v151
  %189 = vmatprep.subr.bf16.mxu0 0
  %190 = vmatpush1.bf16.msra.mxu0 %v152
  %191 = vmatprep.subr.bf16.mxu0 0
  %192 = vmatpush1.bf16.msra.mxu0 %v153
  %193 = vmatprep.subr.bf16.mxu0 0
  %194 = vmatpush1.bf16.msra.mxu0 %v154
  %195 = vmatprep.subr.bf16.mxu0 0
  %196 = vmatpush1.bf16.msra.mxu0 %v155
  %197 = vmatprep.subr.bf16.mxu0 0
  %198 = vmatpush1.bf16.msra.mxu0 %v156
  %199 = vmatprep.subr.bf16.mxu0 0
  %200 = vmatpush1.bf16.msra.mxu0 %v157
  %201 = vmatprep.subr.bf16.mxu0 0
  %202 = vmatpush1.bf16.msra.mxu0 %v158
  %203 = vmatprep.subr.bf16.mxu0 0
  %204 = vmatpush1.bf16.msra.mxu0 %v159
  %205 = vmatprep.subr.bf16.mxu0 0
  %206 = vmatpush1.bf16.msra.mxu0 %v160
  %207 = vmatprep.subr.bf16.mxu0 0
  %208 = vmatpush1.bf16.msra.mxu0 %v161
  %209 = vmatprep.subr.bf16.mxu0 0
  %210 = vmatpush1.bf16.msra.mxu0 %v162
  %211 = vmatprep.mubr.bf16.mxu0 %v76
  %212 = vmatmul.mubr.bf16.gmra.mrb[0].mxu0 %v75
  %v213 = vpop.f32.mrb[0].mxu0
  %v214 = vadd.f32 0.0, %v213
  %v215 = vpop.f32.mrb[0].mxu0
  %v216 = vpop.f32.mrb[0].mxu0
  %v217 = vadd.f32 0.0, %v216
  %v218 = vpop.f32.mrb[0].mxu0
  %219 = vmatprep.mubr.bf16.mxu0 %v78
  %220 = vmatmul.mubr.bf16.gmra.mrb[0].mxu0 %v77
  %v221 = vpop.f32.mrb[0].mxu0
  %v222 = vadd.f32 0.0, %v221
  %v223 = vpop.f32.mrb[0].mxu0
  %v224 = vpop.f32.mrb[0].mxu0
  %v225 = vadd.f32 0.0, %v224
  %v226 = vpop.f32.mrb[0].mxu0
  %227 = vdwg.mxu0
  %v228 = vadd.f32 %v23, %v214
  %v229 = vadd.f32 %v24, %v217
  %v230 = vadd.f32 %v25, %v222
  %v231 = vadd.f32 %v26, %v225
  %232 = vst [vmem:[#allocation2] sm:$0xff] %v228
  %233 = vst [vmem:[#allocation2 + $0x8] sm:$0xff] %v229
  %234 = vst [vmem:[#allocation2 + $0x10] sm:$0xff] %v230
  %235 = vst [vmem:[#allocation2 + $0x18] sm:$0xff] %v231
  // Predicated region
  $region18: #{_lambda_.4} parent=0 // pred_check
    %p236 = pneg %p15
  $region19: #{_lambda_.4} parent=0 // pred_check_branch
    %238 = sbr.rel (%p236) target = $region21
  $region20: #{_lambda_.4} parent=0 // pred_region
    %v239 = vld [vmem:[#allocation2] sm:$0xff]
    %v240 = vld [vmem:[#allocation2 + $0x8] sm:$0xff]
    %v241 = vld [vmem:[#allocation2 + $0x10] sm:$0xff]
    %v242 = vld [vmem:[#allocation2 + $0x18] sm:$0xff]
    %v243 = vld [vmem:[%s2] sm:$0x1]
    %v245 = vlaneseq
    %v246 = vshrl.u32 %v245, 7
    %v247 = vsub.s32 0, %v246
    %v248 = vrot.slane %v243, %v247
    %v250 = vadd.f32 %v239, %v248
    %v251 = vadd.f32 %v240, %v248
    %v252 = vadd.f32 %v241, %v248
    %v253 = vadd.f32 %v242, %v248
    %v254 = vmax.f32 %v250, 0.0
    %v255 = vmax.f32 %v251, 0.0
    %v256 = vmax.f32 %v252, 0.0
    %v257 = vmax.f32 %v253, 0.0
    %258 = vst [vmem:[%s3] sm:$0xff] %v254
    %259 = vst [vmem:[%s3 + $0x8] sm:$0xff] %v255
    %260 = vst [vmem:[%s3 + $0x10] sm:$0xff] %v256
    %261 = vst [vmem:[%s3 + $0x18] sm:$0xff] %v257
  $region21: #{_lambda_.4} parent=0 // pred_fallthru
    _
  // Predicated region
  $region22: #{_lambda_.4} parent=0 // pred_check
    _
  $region23: #{_lambda_.4} parent=0 // pred_check_branch
    %263 = sbr.rel (0) target = $region25
  $region24: #{_lambda_.4} parent=0 // pred_region
    _
  $region25: #{_lambda_.4} parent=0 // pred_fallthru
    _
  // Predicated region
  $region26: #{_lambda_.4} parent=0 // pred_check
    _
  $region27: #{_lambda_.4} parent=0 // pred_check_branch
    %265 = sbr.rel (0) target = $region29
  $region28: #{_lambda_.4} parent=0 // pred_region
    _
  $region29: #{_lambda_.4} parent=0 // pred_fallthru
    _

</llo_original>
